<compile_context>
chip_gen: v5e
topology: v5e:2x2
jax: 0.10.0
libtpu: 0.0.40
codegen_flags: <defaults>
</compile_context>

<pallas_src>
import math
from functools import partial

import jax
import jax.numpy as jnp
import numpy as np
from jax.experimental import pallas as pl
from jax.experimental.pallas import tpu as pltpu


def _default_vmem_limit():
    # ~64-96 MiB on v5e/v6e (128 MiB physical), ~48 MiB on v7x (64 MiB).
    try:
        cap = pltpu.get_tpu_info().vmem_capacity_bytes
        return int(min(cap - 16 * 1024 * 1024, cap * 3 // 4))
    except Exception:
        return 48 * 1024 * 1024  # safe on every generation


_VMEM_LIMIT = _default_vmem_limit()
_ROW_BLOCK = 256  # M tile for the projections (M is padded to a multiple)


# -----------------------------------------------------------------------------
# Projection kernels: resident weight (single K step), no accumulator scratch.
# -----------------------------------------------------------------------------
def _proj_kernel(x_ref, w_ref, o_ref):
    o_ref[...] = jnp.dot(x_ref[...], w_ref[...],
                         preferred_element_type=jnp.float32).astype(o_ref.dtype)


def _proj_bias_kernel(x_ref, w_ref, b_ref, o_ref):
    acc = jnp.dot(x_ref[...], w_ref[...], preferred_element_type=jnp.float32)
    o_ref[...] = (acc + b_ref[...]).astype(o_ref.dtype)


def _resident_matmul(x2d, w, bias=None, *, out_dtype):
    """x2d: (M, K) with M % _ROW_BLOCK == 0 (or M <= _ROW_BLOCK),
    w: (K, Nout) (kept VMEM-resident), bias: (Nout,) f32 or None."""
    M, K = x2d.shape
    Kw, Nout = w.shape
    assert K == Kw
    bm = min(_ROW_BLOCK, M)
    assert M % bm == 0
    grid = (M // bm,)

    flops = 2 * M * K * Nout
    bytes_accessed = (M * K * x2d.dtype.itemsize
                      + K * Nout * w.dtype.itemsize          # read once (resident)
                      + M * Nout * jnp.dtype(out_dtype).itemsize)
    cost = pl.CostEstimate(flops=flops, transcendentals=0,
                           bytes_accessed=bytes_accessed)
    cparams = pltpu.CompilerParams(
        dimension_semantics=("parallel",),
        vmem_limit_bytes=_VMEM_LIMIT)

    x_spec = pl.BlockSpec((bm, K), lambda i: (i, 0))
    w_spec = pl.BlockSpec((K, Nout), lambda i: (0, 0))   # constant -> resident
    o_spec = pl.BlockSpec((bm, Nout), lambda i: (i, 0))

    if bias is None:
        return pl.pallas_call(
            _proj_kernel,
            out_shape=jax.ShapeDtypeStruct((M, Nout), out_dtype),
            grid=grid,
            in_specs=[x_spec, w_spec],
            out_specs=o_spec,
            compiler_params=cparams,
            cost_estimate=cost,
        )(x2d, w)

    b2d = bias.reshape(1, Nout).astype(jnp.float32)
    b_spec = pl.BlockSpec((1, Nout), lambda i: (0, 0))   # resident
    return pl.pallas_call(
        _proj_bias_kernel,
        out_shape=jax.ShapeDtypeStruct((M, Nout), out_dtype),
        grid=grid,
        in_specs=[x_spec, w_spec, b_spec],
        out_specs=o_spec,
        compiler_params=cparams,
        cost_estimate=cost,
    )(x2d, w, b2d)


def _pad_rows(x2d, multiple):
    M = x2d.shape[0]
    Mp = ((M + multiple - 1) // multiple) * multiple
    if Mp == M:
        return x2d
    return jnp.pad(x2d, ((0, Mp - M), (0, 0)))


# -----------------------------------------------------------------------------
# Attention kernels.
# -----------------------------------------------------------------------------
def _mha_block(q, k, v, *, num_heads, head_dim, scale, out_dtype):
    """q/k/v: (N, num_heads*head_dim) bf16.  Returns (N, num_heads*head_dim)."""
    ctxs = []
    for h in range(num_heads):
        lo = h * head_dim
        hi = lo + head_dim
        # q @ k^T, contracting the head dim directly (no in-kernel transpose).
        s = jax.lax.dot_general(
            q[:, lo:hi], k[:, lo:hi],
            dimension_numbers=(((1,), (1,)), ((), ())),
            preferred_element_type=jnp.float32)              # (N, N) f32
        s = s * scale                                         # scale in f32
        m = jnp.max(s, axis=-1, keepdims=True)
        p = jnp.exp(s - m)
        denom = jnp.sum(p, axis=-1, keepdims=True)
        ctx = jnp.dot(p.astype(v.dtype), v[:, lo:hi],
                      preferred_element_type=jnp.float32)     # (N, D) f32
        # Normalize AFTER the PV matmul: N*D mults instead of N*N.
        ctx = ctx * pl.reciprocal(denom, approx=True)
        ctxs.append(ctx.astype(out_dtype))
    return ctxs[0] if len(ctxs) == 1 else jnp.concatenate(ctxs, axis=-1)


def _attn_group_kernel(q_ref, k_ref, v_ref, o_ref, *,
                       heads_per_blk, head_dim, scale):
    # Blocks are (1, N, heads_per_blk*head_dim) -- lane-dense (multiple of 128).
    o_ref[0] = _mha_block(q_ref[0], k_ref[0], v_ref[0],
                          num_heads=heads_per_blk, head_dim=head_dim,
                          scale=scale, out_dtype=o_ref.dtype)


def _attn_fused_kernel(qkv_ref, o_ref, *, num_heads, head_dim, scale):
    # Fallback (C not 128-aligned): one fused (1, N, 3C) block per batch elem.
    C = num_heads * head_dim
    qkv = qkv_ref[0]
    o_ref[0] = _mha_block(qkv[:, :C], qkv[:, C:2 * C], qkv[:, 2 * C:],
                          num_heads=num_heads, head_dim=head_dim,
                          scale=scale, out_dtype=o_ref.dtype)


def _heads_per_group(num_heads, head_dim):
    """Smallest head-group size g (dividing num_heads) with g*head_dim a
    multiple of 128 lanes; None if no such group exists."""
    for g in range(1, num_heads + 1):
        if num_heads % g == 0 and (g * head_dim) % 128 == 0:
            return g
    return None


def _attention_core(qkv, *, num_heads, compute_dtype):
    """qkv: (B, N, 3C) bf16 straight from the qkv projection.
    Returns context in (B, N, C) = (B, N, H*D) layout (no XLA permute)."""
    B, N, C3 = qkv.shape
    C = C3 // 3
    D = C // num_heads
    scale = D ** (-0.5)

    itemsize = jnp.dtype(compute_dtype).itemsize
    cost = pl.CostEstimate(
        flops=4 * B * num_heads * N * N * D,
        transcendentals=B * num_heads * N * N,
        bytes_accessed=4 * B * N * C * itemsize)
    out_shape = jax.ShapeDtypeStruct((B, N, C), compute_dtype)

    g = _heads_per_group(num_heads, D)
    if g is not None:
        Wg = g * D                       # lane width per grid step (mult of 128)
        ngroups = num_heads // g
        nblk = C // Wg                   # blocks per C along the 3C axis
        kern = partial(_attn_group_kernel, heads_per_blk=g, head_dim=D,
                       scale=scale)
        return pl.pallas_call(
            kern,
            out_shape=out_shape,
            grid=(B, ngroups),
            in_specs=[
                pl.BlockSpec((1, N, Wg), lambda b, hg: (b, 0, hg)),             # q
                pl.BlockSpec((1, N, Wg), lambda b, hg: (b, 0, nblk + hg)),      # k
                pl.BlockSpec((1, N, Wg), lambda b, hg: (b, 0, 2 * nblk + hg)),  # v
            ],
            out_specs=pl.BlockSpec((1, N, Wg), lambda b, hg: (b, 0, hg)),
            compiler_params=pltpu.CompilerParams(
                dimension_semantics=("parallel", "parallel"),
                vmem_limit_bytes=_VMEM_LIMIT),
            cost_estimate=cost,
        )(qkv, qkv, qkv)

    # Fallback: full (1, N, 3C) block (always a legal block shape).
    kern = partial(_attn_fused_kernel, num_heads=num_heads, head_dim=D,
                   scale=scale)
    return pl.pallas_call(
        kern,
        out_shape=out_shape,
        grid=(B,),
        in_specs=[pl.BlockSpec((1, N, 3 * C), lambda b: (b, 0, 0))],
        out_specs=pl.BlockSpec((1, N, C), lambda b: (b, 0, 0)),
        compiler_params=pltpu.CompilerParams(
            dimension_semantics=("parallel",),
            vmem_limit_bytes=_VMEM_LIMIT),
        cost_estimate=cost,
    )(qkv)


# -----------------------------------------------------------------------------
# Wrapper
# -----------------------------------------------------------------------------
def prepare_attention_params(w_qkv, w_proj, b_proj,
                             compute_dtype=jnp.bfloat16):
    """One-time parameter prep (transpose + bf16 cast hoisted out of forward).

    w_qkv  : (3C, C) f32 (PyTorch layout, no bias: qkv_bias=False)
    w_proj : (C, C)  f32 (PyTorch layout)
    b_proj : (C,)    f32
    """
    return {
        "wq": jnp.asarray(w_qkv).T.astype(compute_dtype),   # (C, 3C)
        "wp": jnp.asarray(w_proj).T.astype(compute_dtype),  # (C, C)
        "b": jnp.asarray(b_proj, dtype=jnp.float32),        # (C,)
    }


def attention_forward(x, params, *, num_heads, compute_dtype=jnp.bfloat16):
    """Pallas implementation of Attention.forward.  x: (B, N, C) float32."""
    B, N, C = x.shape
    assert C % num_heads == 0
    M = B * N
    out_dtype = x.dtype

    # bf16 operands for the MXU; accumulation / softmax stay f32.
    x2d = x.reshape(M, C).astype(compute_dtype)
    x2d_p = _pad_rows(x2d, _ROW_BLOCK)

    # ---- 1. qkv projection: (M, C) @ (C, 3C), resident weight ---------------
    qkv2d_p = _resident_matmul(x2d_p, params["wq"], bias=None,
                               out_dtype=compute_dtype)
    qkv = qkv2d_p[:M].reshape(B, N, 3 * C)

    # ---- 2. attention (per batch elem x head-group grid) --------------------
    ctx = _attention_core(qkv, num_heads=num_heads,
                          compute_dtype=compute_dtype)

    # ---- 3. output projection: (M, C) @ (C, C) + bias, resident weight ------
    ctx2d_p = _pad_rows(ctx.reshape(M, C), _ROW_BLOCK)
    out2d_p = _resident_matmul(ctx2d_p, params["wp"], bias=params["b"],
                               out_dtype=out_dtype)

    # attn_drop / proj_drop have p=0.0 -> identity (eval mode).
    return out2d_p[:M].reshape(B, N, C)


# -----------------------------------------------------------------------------
# Pure-JAX reference (mirrors the PyTorch forward exactly) for verification.
# -----------------------------------------------------------------------------
def attention_ref(x, w_qkv, w_proj, b_proj, *, num_heads):
    B, N, C = x.shape
    D = C // num_heads
    scale = D ** (-0.5)
    qkv = (x @ w_qkv.T).reshape(B, N, 3, num_heads, D).transpose(2, 0, 3, 1, 4)
    q, k, v = qkv[0], qkv[1], qkv[2]
    attn = (q @ jnp.swapaxes(k, -2, -1)) * scale
    attn = jax.nn.softmax(attn, axis=-1)
    out = (attn @ v).transpose(0, 2, 1, 3).reshape(B, N, C)
    return out @ w_proj.T + b_proj


# -----------------------------------------------------------------------------
if __name__ == "__main__":
    B, N, C = 2, 16, 128
    num_heads = 8   # head_dim = 16

    key = jax.random.PRNGKey(0)
    kx, kq, kp, kb = jax.random.split(key, 4)

    x = jax.random.normal(kx, (B, N, C), dtype=jnp.float32)
    # Deterministic synthetic parameters (PyTorch weight layout: (out, in)).
    w_qkv = jax.random.normal(kq, (3 * C, C), dtype=jnp.float32) * 0.02
    w_proj = jax.random.normal(kp, (C, C), dtype=jnp.float32) * 0.02
    b_proj = jax.random.normal(kb, (C,), dtype=jnp.float32) * 0.02

    # One-time param prep (transpose + bf16 cast) outside the jitted forward.
    params = prepare_attention_params(w_qkv, w_proj, b_proj)

    fwd = jax.jit(partial(attention_forward, num_heads=num_heads))
    out = jax.block_until_ready(fwd(x, params))

    ref = attention_ref(x, w_qkv, w_proj, b_proj, num_heads=num_heads)
    # bf16 matmul operands (f32 accumulation, f32 softmax, approx reciprocal)
    # -> relaxed tolerance.
    np.testing.assert_allclose(np.asarray(out), np.asarray(ref),
                               rtol=3e-2, atol=3e-3)

    print("KERNEL_OK")
</pallas_src>

<mosaic_0001>
module attributes {stable_mosaic.version = 11 : i64} {
  func.func @_proj_kernel(%arg0: i32, %arg1: memref<256x128xbf16, #tpu.memory_space<vmem>>, %arg2: memref<128x384xbf16, #tpu.memory_space<vmem>>, %arg3: memref<256x384xbf16, #tpu.memory_space<vmem>>) attributes {dimension_semantics = [#tpu.dimension_semantics<parallel>], iteration_bounds = array<i64: 1>, scalar_prefetch = 0 : i64, scratch_operands = 0 : i64, tpu.core_type = #tpu.core_type<tc>, window_params = [{transform_indices = @transform_0, window_bounds = array<i64: 256, 128>}, {pipeline_mode = #tpu.pipeline_mode<synchronous>, transform_indices = @transform_1, window_bounds = array<i64: 128, 384>}, {transform_indices = @transform_2, window_bounds = array<i64: 256, 384>}]} {
    %c0 = arith.constant 0 : index
    %c0_0 = arith.constant 0 : index
    %0 = vector.load %arg1[%c0, %c0_0] : memref<256x128xbf16, #tpu.memory_space<vmem>>, vector<256x128xbf16>
    %c0_1 = arith.constant 0 : index
    %c0_2 = arith.constant 0 : index
    %1 = vector.load %arg2[%c0_1, %c0_2] : memref<128x384xbf16, #tpu.memory_space<vmem>>, vector<128x384xbf16>
    %cst = arith.constant dense<0.000000e+00> : vector<256x384xf32>
    %2 = tpu.matmul %0, %1, %cst {dimension_numbers = #tpu.dot_dimension_numbers<[1], [0], [0], [1], [0, 0, 1, 1], [], []>} : vector<256x128xbf16>, vector<128x384xbf16>, vector<256x384xf32> -> vector<256x384xf32>
    %3 = arith.truncf %2 : vector<256x384xf32> to vector<256x384xbf16>
    %c0_3 = arith.constant 0 : index
    %c0_4 = arith.constant 0 : index
    %4 = vector.load %arg3[%c0_3, %c0_4] : memref<256x384xbf16, #tpu.memory_space<vmem>>, vector<256x384xbf16>
    tpu.vector_store %arg3[%c0_3, %c0_4], %3 {strides = array<i32>} : memref<256x384xbf16, #tpu.memory_space<vmem>>, vector<256x384xbf16>,
    return
  }
  func.func @transform_0(%arg0: i32) -> (i32, i32) {
    %c0_i32 = arith.constant 0 : i32
    %c0_i32_0 = arith.constant 0 : i32
    return %arg0, %c0_i32 : i32, i32
  }
  func.func @transform_1(%arg0: i32) -> (i32, i32) {
    %c0_i32 = arith.constant 0 : i32
    %c0_i32_0 = arith.constant 0 : i32
    %c0_i32_1 = arith.constant 0 : i32
    return %c0_i32, %c0_i32_0 : i32, i32
  }
  func.func @transform_2(%arg0: i32) -> (i32, i32) {
    %c0_i32 = arith.constant 0 : i32
    %c0_i32_0 = arith.constant 0 : i32
    return %arg0, %c0_i32 : i32, i32
  }
}

module attributes {stable_mosaic.version = 11 : i64} {
  func.func @_attn_group_kernel(%arg0: i32, %arg1: i32, %arg2: memref<1x16x128xbf16, #tpu.memory_space<vmem>>, %arg3: memref<1x16x128xbf16, #tpu.memory_space<vmem>>, %arg4: memref<1x16x128xbf16, #tpu.memory_space<vmem>>, %arg5: memref<1x16x128xbf16, #tpu.memory_space<vmem>>) attributes {dimension_semantics = [#tpu.dimension_semantics<parallel>, #tpu.dimension_semantics<parallel>], iteration_bounds = array<i64: 2, 1>, scalar_prefetch = 0 : i64, scratch_operands = 0 : i64, tpu.core_type = #tpu.core_type<tc>, window_params = [{transform_indices = @transform_0, window_bounds = array<i64: 1, 16, 128>}, {transform_indices = @transform_1, window_bounds = array<i64: 1, 16, 128>}, {transform_indices = @transform_2, window_bounds = array<i64: 1, 16, 128>}, {transform_indices = @transform_3, window_bounds = array<i64: 1, 16, 128>}]} {
    %c0 = arith.constant 0 : index
    %c0_0 = arith.constant 0 : index
    %c0_1 = arith.constant 0 : index
    %0 = vector.load %arg2[%c0, %c0_0, %c0_1] : memref<1x16x128xbf16, #tpu.memory_space<vmem>>, vector<1x16x128xbf16>
    %1 = vector.shape_cast %0 : vector<1x16x128xbf16> to vector<16x128xbf16>
    %c0_2 = arith.constant 0 : index
    %c0_3 = arith.constant 0 : index
    %c0_4 = arith.constant 0 : index
    %2 = vector.load %arg3[%c0_2, %c0_3, %c0_4] : memref<1x16x128xbf16, #tpu.memory_space<vmem>>, vector<1x16x128xbf16>
    %3 = vector.shape_cast %2 : vector<1x16x128xbf16> to vector<16x128xbf16>
    %c0_5 = arith.constant 0 : index
    %c0_6 = arith.constant 0 : index
    %c0_7 = arith.constant 0 : index
    %4 = vector.load %arg4[%c0_5, %c0_6, %c0_7] : memref<1x16x128xbf16, #tpu.memory_space<vmem>>, vector<1x16x128xbf16>
    %5 = vector.shape_cast %4 : vector<1x16x128xbf16> to vector<16x128xbf16>
    %6 = vector.extract_strided_slice %1 {offsets = [0, 0], sizes = [16, 16], strides = [1, 1]} : vector<16x128xbf16> to vector<16x16xbf16>
    %7 = vector.extract_strided_slice %3 {offsets = [0, 0], sizes = [16, 16], strides = [1, 1]} : vector<16x128xbf16> to vector<16x16xbf16>
    %cst = arith.constant dense<0.000000e+00> : vector<16x16xf32>
    %8 = tpu.matmul %6, %7, %cst {dimension_numbers = #tpu.dot_dimension_numbers<[1], [1], [0], [0], [0, 0, 1, 0], [], []>} : vector<16x16xbf16>, vector<16x16xbf16>, vector<16x16xf32> -> vector<16x16xf32>
    %cst_8 = arith.constant 2.500000e-01 : f32
    %9 = vector.broadcast %cst_8 : f32 to vector<16x16xf32>
    %10 = arith.mulf %8, %9 : vector<16x16xf32>
    %cst_9 = arith.constant dense<0xFF800000> : vector<16xf32>
    %11 = vector.multi_reduction <maximumf>, %10, %cst_9 [1] : vector<16x16xf32> to vector<16xf32>
    %12 = vector.shape_cast %11 : vector<16xf32> to vector<16x1xf32>
    %13 = vector.broadcast %12 : vector<16x1xf32> to vector<16x16xf32>
    %14 = arith.subf %10, %13 : vector<16x16xf32>
    %15 = math.exp %14 : vector<16x16xf32>
    %cst_10 = arith.constant dense<0.000000e+00> : vector<16xf32>
    %16 = vector.multi_reduction <add>, %15, %cst_10 [1] : vector<16x16xf32> to vector<16xf32>
    %17 = vector.shape_cast %16 : vector<16xf32> to vector<16x1xf32>
    %18 = arith.truncf %15 : vector<16x16xf32> to vector<16x16xbf16>
    %19 = vector.extract_strided_slice %5 {offsets = [0, 0], sizes = [16, 16], strides = [1, 1]} : vector<16x128xbf16> to vector<16x16xbf16>
    %cst_11 = arith.constant dense<0.000000e+00> : vector<16x16xf32>
    %20 = tpu.matmul %18, %19, %cst_11 {dimension_numbers = #tpu.dot_dimension_numbers<[1], [0], [0], [1], [0, 0, 1, 1], [], []>} : vector<16x16xbf16>, vector<16x16xbf16>, vector<16x16xf32> -> vector<16x16xf32>
    %21 = tpu.reciprocal %17 {approx = true} : vector<16x1xf32> -> vector<16x1xf32>
    %22 = vector.broadcast %21 : vector<16x1xf32> to vector<16x16xf32>
    %23 = arith.mulf %20, %22 : vector<16x16xf32>
    %24 = arith.truncf %23 : vector<16x16xf32> to vector<16x16xbf16>
    %25 = vector.extract_strided_slice %1 {offsets = [0, 16], sizes = [16, 16], strides = [1, 1]} : vector<16x128xbf16> to vector<16x16xbf16>
    %26 = vector.extract_strided_slice %3 {offsets = [0, 16], sizes = [16, 16], strides = [1, 1]} : vector<16x128xbf16> to vector<16x16xbf16>
    %cst_12 = arith.constant dense<0.000000e+00> : vector<16x16xf32>
    %27 = tpu.matmul %25, %26, %cst_12 {dimension_numbers = #tpu.dot_dimension_numbers<[1], [1], [0], [0], [0, 0, 1, 0], [], []>} : vector<16x16xbf16>, vector<16x16xbf16>, vector<16x16xf32> -> vector<16x16xf32>
    %cst_13 = arith.constant 2.500000e-01 : f32
    %28 = vector.broadcast %cst_13 : f32 to vector<16x16xf32>
    %29 = arith.mulf %27, %28 : vector<16x16xf32>
    %cst_14 = arith.constant dense<0xFF800000> : vector<16xf32>
    %30 = vector.multi_reduction <maximumf>, %29, %cst_14 [1] : vector<16x16xf32> to vector<16xf32>
    %31 = vector.shape_cast %30 : vector<16xf32> to vector<16x1xf32>
    %32 = vector.broadcast %31 : vector<16x1xf32> to vector<16x16xf32>
    %33 = arith.subf %29, %32 : vector<16x16xf32>
    %34 = math.exp %33 : vector<16x16xf32>
    %cst_15 = arith.constant dense<0.000000e+00> : vector<16xf32>
    %35 = vector.multi_reduction <add>, %34, %cst_15 [1] : vector<16x16xf32> to vector<16xf32>
    %36 = vector.shape_cast %35 : vector<16xf32> to vector<16x1xf32>
    %37 = arith.truncf %34 : vector<16x16xf32> to vector<16x16xbf16>
    %38 = vector.extract_strided_slice %5 {offsets = [0, 16], sizes = [16, 16], strides = [1, 1]} : vector<16x128xbf16> to vector<16x16xbf16>
    %cst_16 = arith.constant dense<0.000000e+00> : vector<16x16xf32>
    %39 = tpu.matmul %37, %38, %cst_16 {dimension_numbers = #tpu.dot_dimension_numbers<[1], [0], [0], [1], [0, 0, 1, 1], [], []>} : vector<16x16xbf16>, vector<16x16xbf16>, vector<16x16xf32> -> vector<16x16xf32>
    %40 = tpu.reciprocal %36 {approx = true} : vector<16x1xf32> -> vector<16x1xf32>
    %41 = vector.broadcast %40 : vector<16x1xf32> to vector<16x16xf32>
    %42 = arith.mulf %39, %41 : vector<16x16xf32>
    %43 = arith.truncf %42 : vector<16x16xf32> to vector<16x16xbf16>
    %44 = vector.extract_strided_slice %1 {offsets = [0, 32], sizes = [16, 16], strides = [1, 1]} : vector<16x128xbf16> to vector<16x16xbf16>
    %45 = vector.extract_strided_slice %3 {offsets = [0, 32], sizes = [16, 16], strides = [1, 1]} : vector<16x128xbf16> to vector<16x16xbf16>
    %cst_17 = arith.constant dense<0.000000e+00> : vector<16x16xf32>
    %46 = tpu.matmul %44, %45, %cst_17 {dimension_numbers = #tpu.dot_dimension_numbers<[1], [1], [0], [0], [0, 0, 1, 0], [], []>} : vector<16x16xbf16>, vector<16x16xbf16>, vector<16x16xf32> -> vector<16x16xf32>
    %cst_18 = arith.constant 2.500000e-01 : f32
    %47 = vector.broadcast %cst_18 : f32 to vector<16x16xf32>
    %48 = arith.mulf %46, %47 : vector<16x16xf32>
    %cst_19 = arith.constant dense<0xFF800000> : vector<16xf32>
    %49 = vector.multi_reduction <maximumf>, %48, %cst_19 [1] : vector<16x16xf32> to vector<16xf32>
    %50 = vector.shape_cast %49 : vector<16xf32> to vector<16x1xf32>
    %51 = vector.broadcast %50 : vector<16x1xf32> to vector<16x16xf32>
    %52 = arith.subf %48, %51 : vector<16x16xf32>
    %53 = math.exp %52 : vector<16x16xf32>
    %cst_20 = arith.constant dense<0.000000e+00> : vector<16xf32>
    %54 = vector.multi_reduction <add>, %53, %cst_20 [1] : vector<16x16xf32> to vector<16xf32>
    %55 = vector.shape_cast %54 : vector<16xf32> to vector<16x1xf32>
    %56 = arith.truncf %53 : vector<16x16xf32> to vector<16x16xbf16>
    %57 = vector.extract_strided_slice %5 {offsets = [0, 32], sizes = [16, 16], strides = [1, 1]} : vector<16x128xbf16> to vector<16x16xbf16>
    %cst_21 = arith.constant dense<0.000000e+00> : vector<16x16xf32>
    %58 = tpu.matmul %56, %57, %cst_21 {dimension_numbers = #tpu.dot_dimension_numbers<[1], [0], [0], [1], [0, 0, 1, 1], [], []>} : vector<16x16xbf16>, vector<16x16xbf16>, vector<16x16xf32> -> vector<16x16xf32>
    %59 = tpu.reciprocal %55 {approx = true} : vector<16x1xf32> -> vector<16x1xf32>
    %60 = vector.broadcast %59 : vector<16x1xf32> to vector<16x16xf32>
    %61 = arith.mulf %58, %60 : vector<16x16xf32>
    %62 = arith.truncf %61 : vector<16x16xf32> to vector<16x16xbf16>
    %63 = vector.extract_strided_slice %1 {offsets = [0, 48], sizes = [16, 16], strides = [1, 1]} : vector<16x128xbf16> to vector<16x16xbf16>
    %64 = vector.extract_strided_slice %3 {offsets = [0, 48], sizes = [16, 16], strides = [1, 1]} : vector<16x128xbf16> to vector<16x16xbf16>
    %cst_22 = arith.constant dense<0.000000e+00> : vector<16x16xf32>
    %65 = tpu.matmul %63, %64, %cst_22 {dimension_numbers = #tpu.dot_dimension_numbers<[1], [1], [0], [0], [0, 0, 1, 0], [], []>} : vector<16x16xbf16>, vector<16x16xbf16>, vector<16x16xf32> -> vector<16x16xf32>
    %cst_23 = arith.constant 2.500000e-01 : f32
    %66 = vector.broadcast %cst_23 : f32 to vector<16x16xf32>
    %67 = arith.mulf %65, %66 : vector<16x16xf32>
    %cst_24 = arith.constant dense<0xFF800000> : vector<16xf32>
    %68 = vector.multi_reduction <maximumf>, %67, %cst_24 [1] : vector<16x16xf32> to vector<16xf32>
    %69 = vector.shape_cast %68 : vector<16xf32> to vector<16x1xf32>
    %70 = vector.broadcast %69 : vector<16x1xf32> to vector<16x16xf32>
    %71 = arith.subf %67, %70 : vector<16x16xf32>
    %72 = math.exp %71 : vector<16x16xf32>
    %cst_25 = arith.constant dense<0.000000e+00> : vector<16xf32>
    %73 = vector.multi_reduction <add>, %72, %cst_25 [1] : vector<16x16xf32> to vector<16xf32>
    %74 = vector.shape_cast %73 : vector<16xf32> to vector<16x1xf32>
    %75 = arith.truncf %72 : vector<16x16xf32> to vector<16x16xbf16>
    %76 = vector.extract_strided_slice %5 {offsets = [0, 48], sizes = [16, 16], strides = [1, 1]} : vector<16x128xbf16> to vector<16x16xbf16>
    %cst_26 = arith.constant dense<0.000000e+00> : vector<16x16xf32>
    %77 = tpu.matmul %75, %76, %cst_26 {dimension_numbers = #tpu.dot_dimension_numbers<[1], [0], [0], [1], [0, 0, 1, 1], [], []>} : vector<16x16xbf16>, vector<16x16xbf16>, vector<16x16xf32> -> vector<16x16xf32>
    %78 = tpu.reciprocal %74 {approx = true} : vector<16x1xf32> -> vector<16x1xf32>
    %79 = vector.broadcast %78 : vector<16x1xf32> to vector<16x16xf32>
    %80 = arith.mulf %77, %79 : vector<16x16xf32>
    %81 = arith.truncf %80 : vector<16x16xf32> to vector<16x16xbf16>
    %82 = vector.extract_strided_slice %1 {offsets = [0, 64], sizes = [16, 16], strides = [1, 1]} : vector<16x128xbf16> to vector<16x16xbf16>
    %83 = vector.extract_strided_slice %3 {offsets = [0, 64], sizes = [16, 16], strides = [1, 1]} : vector<16x128xbf16> to vector<16x16xbf16>
    %cst_27 = arith.constant dense<0.000000e+00> : vector<16x16xf32>
    %84 = tpu.matmul %82, %83, %cst_27 {dimension_numbers = #tpu.dot_dimension_numbers<[1], [1], [0], [0], [0, 0, 1, 0], [], []>} : vector<16x16xbf16>, vector<16x16xbf16>, vector<16x16xf32> -> vector<16x16xf32>
    %cst_28 = arith.constant 2.500000e-01 : f32
    %85 = vector.broadcast %cst_28 : f32 to vector<16x16xf32>
    %86 = arith.mulf %84, %85 : vector<16x16xf32>
    %cst_29 = arith.constant dense<0xFF800000> : vector<16xf32>
    %87 = vector.multi_reduction <maximumf>, %86, %cst_29 [1] : vector<16x16xf32> to vector<16xf32>
    %88 = vector.shape_cast %87 : vector<16xf32> to vector<16x1xf32>
    %89 = vector.broadcast %88 : vector<16x1xf32> to vector<16x16xf32>
    %90 = arith.subf %86, %89 : vector<16x16xf32>
    %91 = math.exp %90 : vector<16x16xf32>
    %cst_30 = arith.constant dense<0.000000e+00> : vector<16xf32>
    %92 = vector.multi_reduction <add>, %91, %cst_30 [1] : vector<16x16xf32> to vector<16xf32>
    %93 = vector.shape_cast %92 : vector<16xf32> to vector<16x1xf32>
    %94 = arith.truncf %91 : vector<16x16xf32> to vector<16x16xbf16>
    %95 = vector.extract_strided_slice %5 {offsets = [0, 64], sizes = [16, 16], strides = [1, 1]} : vector<16x128xbf16> to vector<16x16xbf16>
    %cst_31 = arith.constant dense<0.000000e+00> : vector<16x16xf32>
    %96 = tpu.matmul %94, %95, %cst_31 {dimension_numbers = #tpu.dot_dimension_numbers<[1], [0], [0], [1], [0, 0, 1, 1], [], []>} : vector<16x16xbf16>, vector<16x16xbf16>, vector<16x16xf32> -> vector<16x16xf32>
    %97 = tpu.reciprocal %93 {approx = true} : vector<16x1xf32> -> vector<16x1xf32>
    %98 = vector.broadcast %97 : vector<16x1xf32> to vector<16x16xf32>
    %99 = arith.mulf %96, %98 : vector<16x16xf32>
    %100 = arith.truncf %99 : vector<16x16xf32> to vector<16x16xbf16>
    %101 = vector.extract_strided_slice %1 {offsets = [0, 80], sizes = [16, 16], strides = [1, 1]} : vector<16x128xbf16> to vector<16x16xbf16>
    %102 = vector.extract_strided_slice %3 {offsets = [0, 80], sizes = [16, 16], strides = [1, 1]} : vector<16x128xbf16> to vector<16x16xbf16>
    %cst_32 = arith.constant dense<0.000000e+00> : vector<16x16xf32>
    %103 = tpu.matmul %101, %102, %cst_32 {dimension_numbers = #tpu.dot_dimension_numbers<[1], [1], [0], [0], [0, 0, 1, 0], [], []>} : vector<16x16xbf16>, vector<16x16xbf16>, vector<16x16xf32> -> vector<16x16xf32>
    %cst_33 = arith.constant 2.500000e-01 : f32
    %104 = vector.broadcast %cst_33 : f32 to vector<16x16xf32>
    %105 = arith.mulf %103, %104 : vector<16x16xf32>
    %cst_34 = arith.constant dense<0xFF800000> : vector<16xf32>
    %106 = vector.multi_reduction <maximumf>, %105, %cst_34 [1] : vector<16x16xf32> to vector<16xf32>
    %107 = vector.shape_cast %106 : vector<16xf32> to vector<16x1xf32>
    %108 = vector.broadcast %107 : vector<16x1xf32> to vector<16x16xf32>
    %109 = arith.subf %105, %108 : vector<16x16xf32>
    %110 = math.exp %109 : vector<16x16xf32>
    %cst_35 = arith.constant dense<0.000000e+00> : vector<16xf32>
    %111 = vector.multi_reduction <add>, %110, %cst_35 [1] : vector<16x16xf32> to vector<16xf32>
    %112 = vector.shape_cast %111 : vector<16xf32> to vector<16x1xf32>
    %113 = arith.truncf %110 : vector<16x16xf32> to vector<16x16xbf16>
    %114 = vector.extract_strided_slice %5 {offsets = [0, 80], sizes = [16, 16], strides = [1, 1]} : vector<16x128xbf16> to vector<16x16xbf16>
    %cst_36 = arith.constant dense<0.000000e+00> : vector<16x16xf32>
    %115 = tpu.matmul %113, %114, %cst_36 {dimension_numbers = #tpu.dot_dimension_numbers<[1], [0], [0], [1], [0, 0, 1, 1], [], []>} : vector<16x16xbf16>, vector<16x16xbf16>, vector<16x16xf32> -> vector<16x16xf32>
    %116 = tpu.reciprocal %112 {approx = true} : vector<16x1xf32> -> vector<16x1xf32>
    %117 = vector.broadcast %116 : vector<16x1xf32> to vector<16x16xf32>
    %118 = arith.mulf %115, %117 : vector<16x16xf32>
    %119 = arith.truncf %118 : vector<16x16xf32> to vector<16x16xbf16>
    %120 = vector.extract_strided_slice %1 {offsets = [0, 96], sizes = [16, 16], strides = [1, 1]} : vector<16x128xbf16> to vector<16x16xbf16>
    %121 = vector.extract_strided_slice %3 {offsets = [0, 96], sizes = [16, 16], strides = [1, 1]} : vector<16x128xbf16> to vector<16x16xbf16>
    %cst_37 = arith.constant dense<0.000000e+00> : vector<16x16xf32>
    %122 = tpu.matmul %120, %121, %cst_37 {dimension_numbers = #tpu.dot_dimension_numbers<[1], [1], [0], [0], [0, 0, 1, 0], [], []>} : vector<16x16xbf16>, vector<16x16xbf16>, vector<16x16xf32> -> vector<16x16xf32>
    %cst_38 = arith.constant 2.500000e-01 : f32
    %123 = vector.broadcast %cst_38 : f32 to vector<16x16xf32>
    %124 = arith.mulf %122, %123 : vector<16x16xf32>
    %cst_39 = arith.constant dense<0xFF800000> : vector<16xf32>
    %125 = vector.multi_reduction <maximumf>, %124, %cst_39 [1] : vector<16x16xf32> to vector<16xf32>
    %126 = vector.shape_cast %125 : vector<16xf32> to vector<16x1xf32>
    %127 = vector.broadcast %126 : vector<16x1xf32> to vector<16x16xf32>
    %128 = arith.subf %124, %127 : vector<16x16xf32>
    %129 = math.exp %128 : vector<16x16xf32>
    %cst_40 = arith.constant dense<0.000000e+00> : vector<16xf32>
    %130 = vector.multi_reduction <add>, %129, %cst_40 [1] : vector<16x16xf32> to vector<16xf32>
    %131 = vector.shape_cast %130 : vector<16xf32> to vector<16x1xf32>
    %132 = arith.truncf %129 : vector<16x16xf32> to vector<16x16xbf16>
    %133 = vector.extract_strided_slice %5 {offsets = [0, 96], sizes = [16, 16], strides = [1, 1]} : vector<16x128xbf16> to vector<16x16xbf16>
    %cst_41 = arith.constant dense<0.000000e+00> : vector<16x16xf32>
    %134 = tpu.matmul %132, %133, %cst_41 {dimension_numbers = #tpu.dot_dimension_numbers<[1], [0], [0], [1], [0, 0, 1, 1], [], []>} : vector<16x16xbf16>, vector<16x16xbf16>, vector<16x16xf32> -> vector<16x16xf32>
    %135 = tpu.reciprocal %131 {approx = true} : vector<16x1xf32> -> vector<16x1xf32>
    %136 = vector.broadcast %135 : vector<16x1xf32> to vector<16x16xf32>
    %137 = arith.mulf %134, %136 : vector<16x16xf32>
    %138 = arith.truncf %137 : vector<16x16xf32> to vector<16x16xbf16>
    %139 = vector.extract_strided_slice %1 {offsets = [0, 112], sizes = [16, 16], strides = [1, 1]} : vector<16x128xbf16> to vector<16x16xbf16>
    %140 = vector.extract_strided_slice %3 {offsets = [0, 112], sizes = [16, 16], strides = [1, 1]} : vector<16x128xbf16> to vector<16x16xbf16>
    %cst_42 = arith.constant dense<0.000000e+00> : vector<16x16xf32>
    %141 = tpu.matmul %139, %140, %cst_42 {dimension_numbers = #tpu.dot_dimension_numbers<[1], [1], [0], [0], [0, 0, 1, 0], [], []>} : vector<16x16xbf16>, vector<16x16xbf16>, vector<16x16xf32> -> vector<16x16xf32>
    %cst_43 = arith.constant 2.500000e-01 : f32
    %142 = vector.broadcast %cst_43 : f32 to vector<16x16xf32>
    %143 = arith.mulf %141, %142 : vector<16x16xf32>
    %cst_44 = arith.constant dense<0xFF800000> : vector<16xf32>
    %144 = vector.multi_reduction <maximumf>, %143, %cst_44 [1] : vector<16x16xf32> to vector<16xf32>
    %145 = vector.shape_cast %144 : vector<16xf32> to vector<16x1xf32>
    %146 = vector.broadcast %145 : vector<16x1xf32> to vector<16x16xf32>
    %147 = arith.subf %143, %146 : vector<16x16xf32>
    %148 = math.exp %147 : vector<16x16xf32>
    %cst_45 = arith.constant dense<0.000000e+00> : vector<16xf32>
    %149 = vector.multi_reduction <add>, %148, %cst_45 [1] : vector<16x16xf32> to vector<16xf32>
    %150 = vector.shape_cast %149 : vector<16xf32> to vector<16x1xf32>
    %151 = arith.truncf %148 : vector<16x16xf32> to vector<16x16xbf16>
    %152 = vector.extract_strided_slice %5 {offsets = [0, 112], sizes = [16, 16], strides = [1, 1]} : vector<16x128xbf16> to vector<16x16xbf16>
    %cst_46 = arith.constant dense<0.000000e+00> : vector<16x16xf32>
    %153 = tpu.matmul %151, %152, %cst_46 {dimension_numbers = #tpu.dot_dimension_numbers<[1], [0], [0], [1], [0, 0, 1, 1], [], []>} : vector<16x16xbf16>, vector<16x16xbf16>, vector<16x16xf32> -> vector<16x16xf32>
    %154 = tpu.reciprocal %150 {approx = true} : vector<16x1xf32> -> vector<16x1xf32>
    %155 = vector.broadcast %154 : vector<16x1xf32> to vector<16x16xf32>
    %156 = arith.mulf %153, %155 : vector<16x16xf32>
    %157 = arith.truncf %156 : vector<16x16xf32> to vector<16x16xbf16>
    %158 = tpu.concatenate %24, %43, %62, %81, %100, %119, %138, %157 in 1 : vector<16x16xbf16>, vector<16x16xbf16>, vector<16x16xbf16>, vector<16x16xbf16>, vector<16x16xbf16>, vector<16x16xbf16>, vector<16x16xbf16>, vector<16x16xbf16> -> vector<16x128xbf16>
    %c0_47 = arith.constant 0 : index
    %c0_48 = arith.constant 0 : index
    %c0_49 = arith.constant 0 : index
    %159 = vector.load %arg5[%c0_47, %c0_48, %c0_49] : memref<1x16x128xbf16, #tpu.memory_space<vmem>>, vector<1x16x128xbf16>
    %160 = vector.shape_cast %159 : vector<1x16x128xbf16> to vector<16x128xbf16>
    %161 = vector.shape_cast %158 : vector<16x128xbf16> to vector<1x16x128xbf16>
    tpu.vector_store %arg5[%c0_47, %c0_48, %c0_49], %161 {strides = array<i32>} : memref<1x16x128xbf16, #tpu.memory_space<vmem>>, vector<1x16x128xbf16>,
    return
  }
  func.func @transform_0(%arg0: i32, %arg1: i32) -> (i32, i32, i32) {
    %c0_i32 = arith.constant 0 : i32
    %c0_i32_0 = arith.constant 0 : i32
    return %arg0, %c0_i32, %arg1 : i32, i32, i32
  }
  func.func @transform_1(%arg0: i32, %arg1: i32) -> (i32, i32, i32) {
    %c1_i32 = arith.constant 1 : i32
    %0 = arith.addi %c1_i32, %arg1 : i32
    %c0_i32 = arith.constant 0 : i32
    %c0_i32_0 = arith.constant 0 : i32
    return %arg0, %c0_i32, %0 : i32, i32, i32
  }
  func.func @transform_2(%arg0: i32, %arg1: i32) -> (i32, i32, i32) {
    %c2_i32 = arith.constant 2 : i32
    %0 = arith.addi %c2_i32, %arg1 : i32
    %c0_i32 = arith.constant 0 : i32
    %c0_i32_0 = arith.constant 0 : i32
    return %arg0, %c0_i32, %0 : i32, i32, i32
  }
  func.func @transform_3(%arg0: i32, %arg1: i32) -> (i32, i32, i32) {
    %c0_i32 = arith.constant 0 : i32
    %c0_i32_0 = arith.constant 0 : i32
    return %arg0, %c0_i32, %arg1 : i32, i32, i32
  }
}

module attributes {stable_mosaic.version = 11 : i64} {
  func.func @_proj_bias_kernel(%arg0: i32, %arg1: memref<256x128xbf16, #tpu.memory_space<vmem>>, %arg2: memref<128x128xbf16, #tpu.memory_space<vmem>>, %arg3: memref<1x128xf32, #tpu.memory_space<vmem>>, %arg4: memref<256x128xf32, #tpu.memory_space<vmem>>) attributes {dimension_semantics = [#tpu.dimension_semantics<parallel>], iteration_bounds = array<i64: 1>, scalar_prefetch = 0 : i64, scratch_operands = 0 : i64, tpu.core_type = #tpu.core_type<tc>, window_params = [{transform_indices = @transform_0, window_bounds = array<i64: 256, 128>}, {pipeline_mode = #tpu.pipeline_mode<synchronous>, transform_indices = @transform_1, window_bounds = array<i64: 128, 128>}, {pipeline_mode = #tpu.pipeline_mode<synchronous>, transform_indices = @transform_2, window_bounds = array<i64: 1, 128>}, {transform_indices = @transform_3, window_bounds = array<i64: 256, 128>}]} {
    %c0 = arith.constant 0 : index
    %c0_0 = arith.constant 0 : index
    %0 = vector.load %arg1[%c0, %c0_0] : memref<256x128xbf16, #tpu.memory_space<vmem>>, vector<256x128xbf16>
    %c0_1 = arith.constant 0 : index
    %c0_2 = arith.constant 0 : index
    %1 = vector.load %arg2[%c0_1, %c0_2] : memref<128x128xbf16, #tpu.memory_space<vmem>>, vector<128x128xbf16>
    %cst = arith.constant dense<0.000000e+00> : vector<256x128xf32>
    %2 = tpu.matmul %0, %1, %cst {dimension_numbers = #tpu.dot_dimension_numbers<[1], [0], [0], [1], [0, 0, 1, 1], [], []>} : vector<256x128xbf16>, vector<128x128xbf16>, vector<256x128xf32> -> vector<256x128xf32>
    %c0_3 = arith.constant 0 : index
    %c0_4 = arith.constant 0 : index
    %3 = vector.load %arg3[%c0_3, %c0_4] : memref<1x128xf32, #tpu.memory_space<vmem>>, vector<1x128xf32>
    %4 = vector.broadcast %3 : vector<1x128xf32> to vector<256x128xf32>
    %5 = arith.addf %2, %4 : vector<256x128xf32>
    %c0_5 = arith.constant 0 : index
    %c0_6 = arith.constant 0 : index
    %6 = vector.load %arg4[%c0_5, %c0_6] : memref<256x128xf32, #tpu.memory_space<vmem>>, vector<256x128xf32>
    tpu.vector_store %arg4[%c0_5, %c0_6], %5 {strides = array<i32>} : memref<256x128xf32, #tpu.memory_space<vmem>>, vector<256x128xf32>,
    return
  }
  func.func @transform_0(%arg0: i32) -> (i32, i32) {
    %c0_i32 = arith.constant 0 : i32
    %c0_i32_0 = arith.constant 0 : i32
    return %arg0, %c0_i32 : i32, i32
  }
  func.func @transform_1(%arg0: i32) -> (i32, i32) {
    %c0_i32 = arith.constant 0 : i32
    %c0_i32_0 = arith.constant 0 : i32
    %c0_i32_1 = arith.constant 0 : i32
    return %c0_i32, %c0_i32_0 : i32, i32
  }
  func.func @transform_2(%arg0: i32) -> (i32, i32) {
    %c0_i32 = arith.constant 0 : i32
    %c0_i32_0 = arith.constant 0 : i32
    %c0_i32_1 = arith.constant 0 : i32
    return %c0_i32, %c0_i32_0 : i32, i32
  }
  func.func @transform_3(%arg0: i32) -> (i32, i32) {
    %c0_i32 = arith.constant 0 : i32
    %c0_i32_0 = arith.constant 0 : i32
    return %arg0, %c0_i32 : i32, i32
  }
}

</mosaic_0001>

<llo_original>
// kernel: attention_forward.3
$region0: #{attention_forward.3}
  #allocation0 [shape = 'u32[]', space=smem, size = 0x4, offset = 0x4, fixed_abs, tag = 'smem constant byte address 0x4 - core index']
  #allocation1 [shape = 'u32[72,128]{1,0:T(1,128)}', space=vmem, size = 0x9000, scoped, tag = 'internal scratch']
  %s0 = inlined_call_operand.vmem [shape: bf16[256,128], index: 0, kind: input, shape index: {}]
  %s1 = inlined_call_operand.vmem [shape: bf16[128,384], index: 1, kind: input, shape index: {}]
  %s2 = inlined_call_operand.vmem [shape: bf16[256,384], index: 2, kind: output, shape index: {}]
  %s3 = sld [smem:[#allocation0]]
  $region18: #{attention_forward.3} parent=0
    _
  %s5 = ssub.s32 1, %s3
  %s6 = scalar_select 0, %s5, %s3
  // Predicated region
  $region2: #{attention_forward.3} parent=0 // pred_check
    _
  $region3: #{attention_forward.3} parent=0 // pred_check_branch
    %8 = sbr.rel (0) target = $region5
  $region4: #{attention_forward.3} parent=0 // pred_region
    _
  $region5: #{attention_forward.3} parent=0 // pred_fallthru
    _
  // Predicated region
  $region6: #{attention_forward.3} parent=0 // pred_check
    _
  $region7: #{attention_forward.3} parent=0 // pred_check_branch
    %10 = sbr.rel (0) target = $region9
  $region8: #{attention_forward.3} parent=0 // pred_region
    _
  $region9: #{attention_forward.3} parent=0 // pred_fallthru
    _
  %v11 = vld [vmem:[%s0] sm:$0xf]
  %v12 = vld [vmem:[%s0 + $0x4] sm:$0xf]
  %v13 = vld [vmem:[%s0 + $0x8] sm:$0xf]
  %v14 = vld [vmem:[%s0 + $0xc] sm:$0xf]
  %v15 = vld [vmem:[%s0 + $0x10] sm:$0xf]
  %v16 = vld [vmem:[%s0 + $0x14] sm:$0xf]
  %v17 = vld [vmem:[%s0 + $0x18] sm:$0xf]
  %v18 = vld [vmem:[%s0 + $0x1c] sm:$0xf]
  %v19 = vld [vmem:[%s0 + $0x20] sm:$0xf]
  %v20 = vld [vmem:[%s0 + $0x24] sm:$0xf]
  %v21 = vld [vmem:[%s0 + $0x28] sm:$0xf]
  %v22 = vld [vmem:[%s0 + $0x2c] sm:$0xf]
  %v23 = vld [vmem:[%s0 + $0x30] sm:$0xf]
  %v24 = vld [vmem:[%s0 + $0x34] sm:$0xf]
  %v25 = vld [vmem:[%s0 + $0x38] sm:$0xf]
  %v26 = vld [vmem:[%s0 + $0x3c] sm:$0xf]
  %v27 = vld [vmem:[%s0 + $0x40] sm:$0xf]
  %v28 = vld [vmem:[%s0 + $0x44] sm:$0xf]
  %v29 = vld [vmem:[%s0 + $0x48] sm:$0xf]
  %v30 = vld [vmem:[%s0 + $0x4c] sm:$0xf]
  %v31 = vld [vmem:[%s0 + $0x50] sm:$0xf]
  %v32 = vld [vmem:[%s0 + $0x54] sm:$0xf]
  %v33 = vld [vmem:[%s0 + $0x58] sm:$0xf]
  %v34 = vld [vmem:[%s0 + $0x5c] sm:$0xf]
  %v35 = vld [vmem:[%s0 + $0x60] sm:$0xf]
  %v36 = vld [vmem:[%s0 + $0x64] sm:$0xf]
  %v37 = vld [vmem:[%s0 + $0x68] sm:$0xf]
  %v38 = vld [vmem:[%s0 + $0x6c] sm:$0xf]
  %v39 = vld [vmem:[%s0 + $0x70] sm:$0xf]
  %v40 = vld [vmem:[%s0 + $0x74] sm:$0xf]
  %v41 = vld [vmem:[%s0 + $0x78] sm:$0xf]
  %v42 = vld [vmem:[%s0 + $0x7c] sm:$0xf]
  %v43 = vld [vmem:[%s1] sm:$0xff]
  %v44 = vld [vmem:[%s1 + $0x8] sm:$0xf]
  %v45 = vld [vmem:[%s1 + $0xc] sm:$0xff]
  %v46 = vld [vmem:[%s1 + $0x14] sm:$0xf]
  %v47 = vld [vmem:[%s1 + $0x18] sm:$0xff]
  %v48 = vld [vmem:[%s1 + $0x20] sm:$0xf]
  %v49 = vld [vmem:[%s1 + $0x24] sm:$0xff]
  %v50 = vld [vmem:[%s1 + $0x2c] sm:$0xf]
  %v51 = vld [vmem:[%s1 + $0x30] sm:$0xff]
  %v52 = vld [vmem:[%s1 + $0x38] sm:$0xf]
  %v53 = vld [vmem:[%s1 + $0x3c] sm:$0xff]
  %v54 = vld [vmem:[%s1 + $0x44] sm:$0xf]
  %v55 = vld [vmem:[%s1 + $0x48] sm:$0xff]
  %v56 = vld [vmem:[%s1 + $0x50] sm:$0xf]
  %v57 = vld [vmem:[%s1 + $0x54] sm:$0xff]
  %v58 = vld [vmem:[%s1 + $0x5c] sm:$0xf]
  %v59 = vld [vmem:[%s1 + $0x60] sm:$0xff]
  %v60 = vld [vmem:[%s1 + $0x68] sm:$0xf]
  %v61 = vld [vmem:[%s1 + $0x6c] sm:$0xff]
  %v62 = vld [vmem:[%s1 + $0x74] sm:$0xf]
  %v63 = vld [vmem:[%s1 + $0x78] sm:$0xff]
  %v64 = vld [vmem:[%s1 + $0x80] sm:$0xf]
  %v65 = vld [vmem:[%s1 + $0x84] sm:$0xff]
  %v66 = vld [vmem:[%s1 + $0x8c] sm:$0xf]
  %v67 = vld [vmem:[%s1 + $0x90] sm:$0xff]
  %v68 = vld [vmem:[%s1 + $0x98] sm:$0xf]
  %v69 = vld [vmem:[%s1 + $0x9c] sm:$0xff]
  %v70 = vld [vmem:[%s1 + $0xa4] sm:$0xf]
  %v71 = vld [vmem:[%s1 + $0xa8] sm:$0xff]
  %v72 = vld [vmem:[%s1 + $0xb0] sm:$0xf]
  %v73 = vld [vmem:[%s1 + $0xb4] sm:$0xff]
  %v74 = vld [vmem:[%s1 + $0xbc] sm:$0xf]
  %v107 = vunpack.c.l.b16 %v11
  %v108 = vunpack.c.l.b16 %v12
  %v109 = vunpack.c.l.b16 %v13
  %v110 = vunpack.c.l.b16 %v14
  %v111 = vunpack.c.l.b16 %v15
  %v112 = vunpack.c.l.b16 %v16
  %v113 = vunpack.c.l.b16 %v17
  %v114 = vunpack.c.l.b16 %v18
  %v115 = vunpack.c.l.b16 %v19
  %v116 = vunpack.c.l.b16 %v20
  %v117 = vunpack.c.l.b16 %v21
  %v118 = vunpack.c.l.b16 %v22
  %v119 = vunpack.c.l.b16 %v23
  %v120 = vunpack.c.l.b16 %v24
  %v121 = vunpack.c.l.b16 %v25
  %v122 = vunpack.c.l.b16 %v26
  %v123 = vunpack.c.l.b16 %v27
  %v124 = vunpack.c.l.b16 %v28
  %v125 = vunpack.c.l.b16 %v29
  %v126 = vunpack.c.l.b16 %v30
  %v127 = vunpack.c.l.b16 %v31
  %v128 = vunpack.c.l.b16 %v32
  %v129 = vunpack.c.l.b16 %v33
  %v130 = vunpack.c.l.b16 %v34
  %v131 = vunpack.c.l.b16 %v35
  %v132 = vunpack.c.l.b16 %v36
  %v133 = vunpack.c.l.b16 %v37
  %v134 = vunpack.c.l.b16 %v38
  %v135 = vunpack.c.l.b16 %v39
  %v136 = vunpack.c.l.b16 %v40
  %v137 = vunpack.c.l.b16 %v41
  %v138 = vunpack.c.l.b16 %v42
  %v139 = vpack.c.b16 %v108, %v107
  %v140 = vpack.c.b16 %v110, %v109
  %v141 = vpack.c.b16 %v112, %v111
  %v142 = vpack.c.b16 %v114, %v113
  %v143 = vpack.c.b16 %v116, %v115
  %v144 = vpack.c.b16 %v118, %v117
  %v145 = vpack.c.b16 %v120, %v119
  %v146 = vpack.c.b16 %v122, %v121
  %v147 = vpack.c.b16 %v124, %v123
  %v148 = vpack.c.b16 %v126, %v125
  %v149 = vpack.c.b16 %v128, %v127
  %v150 = vpack.c.b16 %v130, %v129
  %v151 = vpack.c.b16 %v132, %v131
  %v152 = vpack.c.b16 %v134, %v133
  %v153 = vpack.c.b16 %v136, %v135
  %v154 = vpack.c.b16 %v138, %v137
  %v203 = vunpack.c.l.b16 %v43
  %v204 = vunpack.c.h.b16 %v43
  %v205 = vunpack.c.l.b16 %v44
  %v206 = vunpack.c.l.b16 %v45
  %v207 = vunpack.c.h.b16 %v45
  %v208 = vunpack.c.l.b16 %v46
  %v209 = vunpack.c.l.b16 %v47
  %v210 = vunpack.c.h.b16 %v47
  %v211 = vunpack.c.l.b16 %v48
  %v212 = vunpack.c.l.b16 %v49
  %v213 = vunpack.c.h.b16 %v49
  %v214 = vunpack.c.l.b16 %v50
  %v215 = vunpack.c.l.b16 %v51
  %v216 = vunpack.c.h.b16 %v51
  %v217 = vunpack.c.l.b16 %v52
  %v218 = vunpack.c.l.b16 %v53
  %v219 = vunpack.c.h.b16 %v53
  %v220 = vunpack.c.l.b16 %v54
  %v221 = vunpack.c.l.b16 %v55
  %v222 = vunpack.c.h.b16 %v55
  %v223 = vunpack.c.l.b16 %v56
  %v224 = vunpack.c.l.b16 %v57
  %v225 = vunpack.c.h.b16 %v57
  %v226 = vunpack.c.l.b16 %v58
  %v227 = vunpack.c.l.b16 %v59
  %v228 = vunpack.c.h.b16 %v59
  %v229 = vunpack.c.l.b16 %v60
  %v230 = vunpack.c.l.b16 %v61
  %v231 = vunpack.c.h.b16 %v61
  %v232 = vunpack.c.l.b16 %v62
  %v233 = vunpack.c.l.b16 %v63
  %v234 = vunpack.c.h.b16 %v63
  %v235 = vunpack.c.l.b16 %v64
  %v236 = vunpack.c.l.b16 %v65
  %v237 = vunpack.c.h.b16 %v65
  %v238 = vunpack.c.l.b16 %v66
  %v239 = vunpack.c.l.b16 %v67
  %v240 = vunpack.c.h.b16 %v67
  %v241 = vunpack.c.l.b16 %v68
  %v242 = vunpack.c.l.b16 %v69
  %v243 = vunpack.c.h.b16 %v69
  %v244 = vunpack.c.l.b16 %v70
  %v245 = vunpack.c.l.b16 %v71
  %v246 = vunpack.c.h.b16 %v71
  %v247 = vunpack.c.l.b16 %v72
  %v248 = vunpack.c.l.b16 %v73
  %v249 = vunpack.c.h.b16 %v73
  %v250 = vunpack.c.l.b16 %v74
  %v251 = vpack.c.b16 %v206, %v203
  %v252 = vpack.c.b16 %v207, %v204
  %v253 = vpack.c.b16 %v208, %v205
  %v254 = vpack.c.b16 %v212, %v209
  %v255 = vpack.c.b16 %v213, %v210
  %v256 = vpack.c.b16 %v214, %v211
  %v257 = vpack.c.b16 %v218, %v215
  %v258 = vpack.c.b16 %v219, %v216
  %v259 = vpack.c.b16 %v220, %v217
  %v260 = vpack.c.b16 %v224, %v221
  %v261 = vpack.c.b16 %v225, %v222
  %v262 = vpack.c.b16 %v226, %v223
  %v263 = vpack.c.b16 %v230, %v227
  %v264 = vpack.c.b16 %v231, %v228
  %v265 = vpack.c.b16 %v232, %v229
  %v266 = vpack.c.b16 %v236, %v233
  %v267 = vpack.c.b16 %v237, %v234
  %v268 = vpack.c.b16 %v238, %v235
  %v269 = vpack.c.b16 %v242, %v239
  %v270 = vpack.c.b16 %v243, %v240
  %v271 = vpack.c.b16 %v244, %v241
  %v272 = vpack.c.b16 %v248, %v245
  %v273 = vpack.c.b16 %v249, %v246
  %v274 = vpack.c.b16 %v250, %v247
  %299 = vmatpush.bf16.msra.mxu0 %v272
  %300 = vmatpush.bf16.msra.mxu0 %v269
  %301 = vmatpush.bf16.msra.mxu0 %v266
  %302 = vmatpush.bf16.msra.mxu0 %v263
  %303 = vmatpush.bf16.msra.mxu0 %v260
  %304 = vmatpush.bf16.msra.mxu0 %v257
  %305 = vmatpush.bf16.msra.mxu0 %v254
  %306 = vmatpush.bf16.msra.mxu0 %v251
  %307 = vmatmul.bf16.gmra.mxu0 %v139
  %v308 = vpop.f32.mrf.mxu0
  %v309 = vadd.f32 0.0, %v308
  %v310 = vpop.f32.mrf.mxu0
  %v311 = vadd.f32 0.0, %v310
  %312 = vmatmul.bf16.gmra.mxu0 %v140
  %v313 = vpop.f32.mrf.mxu0
  %v314 = vadd.f32 0.0, %v313
  %v315 = vpop.f32.mrf.mxu0
  %v316 = vadd.f32 0.0, %v315
  %317 = vmatmul.bf16.gmra.mxu0 %v141
  %v318 = vpop.f32.mrf.mxu0
  %v319 = vadd.f32 0.0, %v318
  %v320 = vpop.f32.mrf.mxu0
  %v321 = vadd.f32 0.0, %v320
  %322 = vmatmul.bf16.gmra.mxu0 %v142
  %v323 = vpop.f32.mrf.mxu0
  %v324 = vadd.f32 0.0, %v323
  %v325 = vpop.f32.mrf.mxu0
  %v326 = vadd.f32 0.0, %v325
  %327 = vmatmul.bf16.gmra.mxu0 %v143
  %v328 = vpop.f32.mrf.mxu0
  %v329 = vadd.f32 0.0, %v328
  %v330 = vpop.f32.mrf.mxu0
  %v331 = vadd.f32 0.0, %v330
  %332 = vmatmul.bf16.gmra.mxu0 %v144
  %v333 = vpop.f32.mrf.mxu0
  %v334 = vadd.f32 0.0, %v333
  %v335 = vpop.f32.mrf.mxu0
  %v336 = vadd.f32 0.0, %v335
  %337 = vmatmul.bf16.gmra.mxu0 %v145
  %v338 = vpop.f32.mrf.mxu0
  %v339 = vadd.f32 0.0, %v338
  %v340 = vpop.f32.mrf.mxu0
  %v341 = vadd.f32 0.0, %v340
  %342 = vmatmul.bf16.gmra.mxu0 %v146
  %v343 = vpop.f32.mrf.mxu0
  %v344 = vadd.f32 0.0, %v343
  %v345 = vpop.f32.mrf.mxu0
  %v346 = vadd.f32 0.0, %v345
  %347 = vmatmul.bf16.gmra.mxu0 %v147
  %v348 = vpop.f32.mrf.mxu0
  %v349 = vadd.f32 0.0, %v348
  %v350 = vpop.f32.mrf.mxu0
  %v351 = vadd.f32 0.0, %v350
  %352 = vmatmul.bf16.gmra.mxu0 %v148
  %v353 = vpop.f32.mrf.mxu0
  %v354 = vadd.f32 0.0, %v353
  %v355 = vpop.f32.mrf.mxu0
  %v356 = vadd.f32 0.0, %v355
  %357 = vmatmul.bf16.gmra.mxu0 %v149
  %v358 = vpop.f32.mrf.mxu0
  %v359 = vadd.f32 0.0, %v358
  %v360 = vpop.f32.mrf.mxu0
  %v361 = vadd.f32 0.0, %v360
  %362 = vmatmul.bf16.gmra.mxu0 %v150
  %v363 = vpop.f32.mrf.mxu0
  %v364 = vadd.f32 0.0, %v363
  %v365 = vpop.f32.mrf.mxu0
  %v366 = vadd.f32 0.0, %v365
  %367 = vmatmul.bf16.gmra.mxu0 %v151
  %v368 = vpop.f32.mrf.mxu0
  %v369 = vadd.f32 0.0, %v368
  %v370 = vpop.f32.mrf.mxu0
  %v371 = vadd.f32 0.0, %v370
  %372 = vmatmul.bf16.gmra.mxu0 %v152
  %v373 = vpop.f32.mrf.mxu0
  %v374 = vadd.f32 0.0, %v373
  %v375 = vpop.f32.mrf.mxu0
  %v376 = vadd.f32 0.0, %v375
  %377 = vmatmul.bf16.gmra.mxu0 %v153
  %v378 = vpop.f32.mrf.mxu0
  %v379 = vadd.f32 0.0, %v378
  %v380 = vpop.f32.mrf.mxu0
  %v381 = vadd.f32 0.0, %v380
  %382 = vmatmul.bf16.gmra.mxu0 %v154
  %v383 = vpop.f32.mrf.mxu0
  %v384 = vadd.f32 0.0, %v383
  %v385 = vpop.f32.mrf.mxu0
  %v386 = vadd.f32 0.0, %v385
  %387 = vdwg.mxu0
  %388 = vmatpush.bf16.msra.mxu0 %v273
  %389 = vmatpush.bf16.msra.mxu0 %v270
  %390 = vmatpush.bf16.msra.mxu0 %v267
  %391 = vmatpush.bf16.msra.mxu0 %v264
  %392 = vmatpush.bf16.msra.mxu0 %v261
  %393 = vmatpush.bf16.msra.mxu0 %v258
  %394 = vmatpush.bf16.msra.mxu0 %v255
  %395 = vmatpush.bf16.msra.mxu0 %v252
  %396 = vmatmul.bf16.gmra.mxu0 %v139
  %v397 = vpop.f32.mrf.mxu0
  %v398 = vadd.f32 0.0, %v397
  %v399 = vpop.f32.mrf.mxu0
  %v400 = vadd.f32 0.0, %v399
  %401 = vmatmul.bf16.gmra.mxu0 %v140
  %v402 = vpop.f32.mrf.mxu0
  %v403 = vadd.f32 0.0, %v402
  %v404 = vpop.f32.mrf.mxu0
  %v405 = vadd.f32 0.0, %v404
  %406 = vmatmul.bf16.gmra.mxu0 %v141
  %v407 = vpop.f32.mrf.mxu0
  %v408 = vadd.f32 0.0, %v407
  %v409 = vpop.f32.mrf.mxu0
  %v410 = vadd.f32 0.0, %v409
  %411 = vmatmul.bf16.gmra.mxu0 %v142
  %v412 = vpop.f32.mrf.mxu0
  %v413 = vadd.f32 0.0, %v412
  %v414 = vpop.f32.mrf.mxu0
  %v415 = vadd.f32 0.0, %v414
  %416 = vmatmul.bf16.gmra.mxu0 %v143
  %v417 = vpop.f32.mrf.mxu0
  %v418 = vadd.f32 0.0, %v417
  %v419 = vpop.f32.mrf.mxu0
  %v420 = vadd.f32 0.0, %v419
  %421 = vmatmul.bf16.gmra.mxu0 %v144
  %v422 = vpop.f32.mrf.mxu0
  %v423 = vadd.f32 0.0, %v422
  %v424 = vpop.f32.mrf.mxu0
  %v425 = vadd.f32 0.0, %v424
  %426 = vmatmul.bf16.gmra.mxu0 %v145
  %v427 = vpop.f32.mrf.mxu0
  %v428 = vadd.f32 0.0, %v427
  %v429 = vpop.f32.mrf.mxu0
  %v430 = vadd.f32 0.0, %v429
  %431 = vmatmul.bf16.gmra.mxu0 %v146
  %v432 = vpop.f32.mrf.mxu0
  %v433 = vadd.f32 0.0, %v432
  %v434 = vpop.f32.mrf.mxu0
  %v435 = vadd.f32 0.0, %v434
  %436 = vmatmul.bf16.gmra.mxu0 %v147
  %v437 = vpop.f32.mrf.mxu0
  %v438 = vadd.f32 0.0, %v437
  %v439 = vpop.f32.mrf.mxu0
  %v440 = vadd.f32 0.0, %v439
  %441 = vmatmul.bf16.gmra.mxu0 %v148
  %v442 = vpop.f32.mrf.mxu0
  %v443 = vadd.f32 0.0, %v442
  %v444 = vpop.f32.mrf.mxu0
  %v445 = vadd.f32 0.0, %v444
  %446 = vmatmul.bf16.gmra.mxu0 %v149
  %v447 = vpop.f32.mrf.mxu0
  %v448 = vadd.f32 0.0, %v447
  %v449 = vpop.f32.mrf.mxu0
  %v450 = vadd.f32 0.0, %v449
  %451 = vmatmul.bf16.gmra.mxu0 %v150
  %v452 = vpop.f32.mrf.mxu0
  %v453 = vadd.f32 0.0, %v452
  %v454 = vpop.f32.mrf.mxu0
  %v455 = vadd.f32 0.0, %v454
  %456 = vmatmul.bf16.gmra.mxu0 %v151
  %v457 = vpop.f32.mrf.mxu0
  %v458 = vadd.f32 0.0, %v457
  %v459 = vpop.f32.mrf.mxu0
  %v460 = vadd.f32 0.0, %v459
  %461 = vmatmul.bf16.gmra.mxu0 %v152
  %v462 = vpop.f32.mrf.mxu0
  %v463 = vadd.f32 0.0, %v462
  %v464 = vpop.f32.mrf.mxu0
  %v465 = vadd.f32 0.0, %v464
  %466 = vmatmul.bf16.gmra.mxu0 %v153
  %v467 = vpop.f32.mrf.mxu0
  %v468 = vadd.f32 0.0, %v467
  %v469 = vpop.f32.mrf.mxu0
  %v470 = vadd.f32 0.0, %v469
  %471 = vmatmul.bf16.gmra.mxu0 %v154
  %v472 = vpop.f32.mrf.mxu0
  %v473 = vadd.f32 0.0, %v472
  %v474 = vpop.f32.mrf.mxu0
  %v475 = vadd.f32 0.0, %v474
  %476 = vdwg.mxu0
  %477 = vmatpush.bf16.msra.mxu0 %v274
  %478 = vmatpush.bf16.msra.mxu0 %v271
  %479 = vmatpush.bf16.msra.mxu0 %v268
  %480 = vmatpush.bf16.msra.mxu0 %v265
  %481 = vmatpush.bf16.msra.mxu0 %v262
  %482 = vmatpush.bf16.msra.mxu0 %v259
  %483 = vmatpush.bf16.msra.mxu0 %v256
  %484 = vmatpush.bf16.msra.mxu0 %v253
  %485 = vmatmul.bf16.gmra.mxu0 %v139
  %v486 = vpop.f32.mrf.mxu0
  %v487 = vadd.f32 0.0, %v486
  %v488 = vpop.f32.mrf.mxu0
  %v489 = vadd.f32 0.0, %v488
  %490 = vmatmul.bf16.gmra.mxu0 %v140
  %v491 = vpop.f32.mrf.mxu0
  %v492 = vadd.f32 0.0, %v491
  %v493 = vpop.f32.mrf.mxu0
  %v494 = vadd.f32 0.0, %v493
  %495 = vmatmul.bf16.gmra.mxu0 %v141
  %v496 = vpop.f32.mrf.mxu0
  %v497 = vadd.f32 0.0, %v496
  %v498 = vpop.f32.mrf.mxu0
  %v499 = vadd.f32 0.0, %v498
  %500 = vmatmul.bf16.gmra.mxu0 %v142
  %v501 = vpop.f32.mrf.mxu0
  %v502 = vadd.f32 0.0, %v501
  %v503 = vpop.f32.mrf.mxu0
  %v504 = vadd.f32 0.0, %v503
  %505 = vmatmul.bf16.gmra.mxu0 %v143
  %v506 = vpop.f32.mrf.mxu0
  %v507 = vadd.f32 0.0, %v506
  %v508 = vpop.f32.mrf.mxu0
  %v509 = vadd.f32 0.0, %v508
  %510 = vmatmul.bf16.gmra.mxu0 %v144
  %v511 = vpop.f32.mrf.mxu0
  %v512 = vadd.f32 0.0, %v511
  %v513 = vpop.f32.mrf.mxu0
  %v514 = vadd.f32 0.0, %v513
  %515 = vmatmul.bf16.gmra.mxu0 %v145
  %v516 = vpop.f32.mrf.mxu0
  %v517 = vadd.f32 0.0, %v516
  %v518 = vpop.f32.mrf.mxu0
  %v519 = vadd.f32 0.0, %v518
  %520 = vmatmul.bf16.gmra.mxu0 %v146
  %v521 = vpop.f32.mrf.mxu0
  %v522 = vadd.f32 0.0, %v521
  %v523 = vpop.f32.mrf.mxu0
  %v524 = vadd.f32 0.0, %v523
  %525 = vmatmul.bf16.gmra.mxu0 %v147
  %v526 = vpop.f32.mrf.mxu0
  %v527 = vadd.f32 0.0, %v526
  %v528 = vpop.f32.mrf.mxu0
  %v529 = vadd.f32 0.0, %v528
  %530 = vmatmul.bf16.gmra.mxu0 %v148
  %v531 = vpop.f32.mrf.mxu0
  %v532 = vadd.f32 0.0, %v531
  %v533 = vpop.f32.mrf.mxu0
  %v534 = vadd.f32 0.0, %v533
  %535 = vmatmul.bf16.gmra.mxu0 %v149
  %v536 = vpop.f32.mrf.mxu0
  %v537 = vadd.f32 0.0, %v536
  %v538 = vpop.f32.mrf.mxu0
  %v539 = vadd.f32 0.0, %v538
  %540 = vmatmul.bf16.gmra.mxu0 %v150
  %v541 = vpop.f32.mrf.mxu0
  %v542 = vadd.f32 0.0, %v541
  %v543 = vpop.f32.mrf.mxu0
  %v544 = vadd.f32 0.0, %v543
  %545 = vmatmul.bf16.gmra.mxu0 %v151
  %v546 = vpop.f32.mrf.mxu0
  %v547 = vadd.f32 0.0, %v546
  %v548 = vpop.f32.mrf.mxu0
  %v549 = vadd.f32 0.0, %v548
  %550 = vmatmul.bf16.gmra.mxu0 %v152
  %v551 = vpop.f32.mrf.mxu0
  %v552 = vadd.f32 0.0, %v551
  %v553 = vpop.f32.mrf.mxu0
  %v554 = vadd.f32 0.0, %v553
  %555 = vmatmul.bf16.gmra.mxu0 %v153
  %v556 = vpop.f32.mrf.mxu0
  %v557 = vadd.f32 0.0, %v556
  %v558 = vpop.f32.mrf.mxu0
  %v559 = vadd.f32 0.0, %v558
  %560 = vmatmul.bf16.gmra.mxu0 %v154
  %v561 = vpop.f32.mrf.mxu0
  %v562 = vadd.f32 0.0, %v561
  %v563 = vpop.f32.mrf.mxu0
  %v564 = vadd.f32 0.0, %v563
  %565 = vdwg.mxu0
  %v566 = vpack.c.bf16 %v398, %v309
  %v567 = vpack.c.bf16 %v487, %v487
  %v568 = vpack.c.bf16 %v400, %v311
  %v569 = vpack.c.bf16 %v489, %v489
  %v570 = vpack.c.bf16 %v403, %v314
  %v571 = vpack.c.bf16 %v492, %v492
  %v572 = vpack.c.bf16 %v405, %v316
  %v573 = vpack.c.bf16 %v494, %v494
  %v574 = vpack.c.bf16 %v408, %v319
  %v575 = vpack.c.bf16 %v497, %v497
  %v576 = vpack.c.bf16 %v410, %v321
  %v577 = vpack.c.bf16 %v499, %v499
  %v578 = vpack.c.bf16 %v413, %v324
  %v579 = vpack.c.bf16 %v502, %v502
  %v580 = vpack.c.bf16 %v415, %v326
  %v581 = vpack.c.bf16 %v504, %v504
  %v582 = vpack.c.bf16 %v418, %v329
  %v583 = vpack.c.bf16 %v507, %v507
  %v584 = vpack.c.bf16 %v420, %v331
  %v585 = vpack.c.bf16 %v509, %v509
  %v586 = vpack.c.bf16 %v423, %v334
  %v587 = vpack.c.bf16 %v512, %v512
  %v588 = vpack.c.bf16 %v425, %v336
  %v589 = vpack.c.bf16 %v514, %v514
  %v590 = vpack.c.bf16 %v428, %v339
  %v591 = vpack.c.bf16 %v517, %v517
  %v592 = vpack.c.bf16 %v430, %v341
  %v593 = vpack.c.bf16 %v519, %v519
  %v594 = vpack.c.bf16 %v433, %v344
  %v595 = vpack.c.bf16 %v522, %v522
  %v596 = vpack.c.bf16 %v435, %v346
  %v597 = vpack.c.bf16 %v524, %v524
  %v598 = vpack.c.bf16 %v438, %v349
  %v599 = vpack.c.bf16 %v527, %v527
  %v600 = vpack.c.bf16 %v440, %v351
  %v601 = vpack.c.bf16 %v529, %v529
  %v602 = vpack.c.bf16 %v443, %v354
  %v603 = vpack.c.bf16 %v532, %v532
  %v604 = vpack.c.bf16 %v445, %v356
  %v605 = vpack.c.bf16 %v534, %v534
  %v606 = vpack.c.bf16 %v448, %v359
  %v607 = vpack.c.bf16 %v537, %v537
  %v608 = vpack.c.bf16 %v450, %v361
  %v609 = vpack.c.bf16 %v539, %v539
  %v610 = vpack.c.bf16 %v453, %v364
  %v611 = vpack.c.bf16 %v542, %v542
  %v612 = vpack.c.bf16 %v455, %v366
  %v613 = vpack.c.bf16 %v544, %v544
  %v614 = vpack.c.bf16 %v458, %v369
  %v615 = vpack.c.bf16 %v547, %v547
  %v616 = vpack.c.bf16 %v460, %v371
  %v617 = vpack.c.bf16 %v549, %v549
  %v618 = vpack.c.bf16 %v463, %v374
  %v619 = vpack.c.bf16 %v552, %v552
  %v620 = vpack.c.bf16 %v465, %v376
  %v621 = vpack.c.bf16 %v554, %v554
  %v622 = vpack.c.bf16 %v468, %v379
  %v623 = vpack.c.bf16 %v557, %v557
  %v624 = vpack.c.bf16 %v470, %v381
  %v625 = vpack.c.bf16 %v559, %v559
  %v626 = vpack.c.bf16 %v473, %v384
  %v627 = vpack.c.bf16 %v562, %v562
  %v628 = vpack.c.bf16 %v475, %v386
  %v629 = vpack.c.bf16 %v564, %v564
  %630 = vst [vmem:[%s2] sm:$0xff] %v566
  %631 = vst [vmem:[%s2 + $0x8] sm:$0xf] %v567
  %632 = vst [vmem:[%s2 + $0xc] sm:$0xff] %v568
  %633 = vst [vmem:[%s2 + $0x14] sm:$0xf] %v569
  %634 = vst [vmem:[%s2 + $0x18] sm:$0xff] %v570
  %635 = vst [vmem:[%s2 + $0x20] sm:$0xf] %v571
  %636 = vst [vmem:[%s2 + $0x24] sm:$0xff] %v572
  %637 = vst [vmem:[%s2 + $0x2c] sm:$0xf] %v573
  %638 = vst [vmem:[%s2 + $0x30] sm:$0xff] %v574
  %639 = vst [vmem:[%s2 + $0x38] sm:$0xf] %v575
  %640 = vst [vmem:[%s2 + $0x3c] sm:$0xff] %v576
  %641 = vst [vmem:[%s2 + $0x44] sm:$0xf] %v577
  %642 = vst [vmem:[%s2 + $0x48] sm:$0xff] %v578
  %643 = vst [vmem:[%s2 + $0x50] sm:$0xf] %v579
  %644 = vst [vmem:[%s2 + $0x54] sm:$0xff] %v580
  %645 = vst [vmem:[%s2 + $0x5c] sm:$0xf] %v581
  %646 = vst [vmem:[%s2 + $0x60] sm:$0xff] %v582
  %647 = vst [vmem:[%s2 + $0x68] sm:$0xf] %v583
  %648 = vst [vmem:[%s2 + $0x6c] sm:$0xff] %v584
  %649 = vst [vmem:[%s2 + $0x74] sm:$0xf] %v585
  %650 = vst [vmem:[%s2 + $0x78] sm:$0xff] %v586
  %651 = vst [vmem:[%s2 + $0x80] sm:$0xf] %v587
  %652 = vst [vmem:[%s2 + $0x84] sm:$0xff] %v588
  %653 = vst [vmem:[%s2 + $0x8c] sm:$0xf] %v589
  %654 = vst [vmem:[%s2 + $0x90] sm:$0xff] %v590
  %655 = vst [vmem:[%s2 + $0x98] sm:$0xf] %v591
  %656 = vst [vmem:[%s2 + $0x9c] sm:$0xff] %v592
  %657 = vst [vmem:[%s2 + $0xa4] sm:$0xf] %v593
  %658 = vst [vmem:[%s2 + $0xa8] sm:$0xff] %v594
  %659 = vst [vmem:[%s2 + $0xb0] sm:$0xf] %v595
  %660 = vst [vmem:[%s2 + $0xb4] sm:$0xff] %v596
  %661 = vst [vmem:[%s2 + $0xbc] sm:$0xf] %v597
  %662 = vst [vmem:[%s2 + $0xc0] sm:$0xff] %v598
  %663 = vst [vmem:[%s2 + $0xc8] sm:$0xf] %v599
  %664 = vst [vmem:[%s2 + $0xcc] sm:$0xff] %v600
  %665 = vst [vmem:[%s2 + $0xd4] sm:$0xf] %v601
  %666 = vst [vmem:[%s2 + $0xd8] sm:$0xff] %v602
  %667 = vst [vmem:[%s2 + $0xe0] sm:$0xf] %v603
  %668 = vst [vmem:[%s2 + $0xe4] sm:$0xff] %v604
  %669 = vst [vmem:[%s2 + $0xec] sm:$0xf] %v605
  %670 = vst [vmem:[%s2 + $0xf0] sm:$0xff] %v606
  %671 = vst [vmem:[%s2 + $0xf8] sm:$0xf] %v607
  %672 = vst [vmem:[%s2 + $0xfc] sm:$0xff] %v608
  %673 = vst [vmem:[%s2 + $0x104] sm:$0xf] %v609
  %674 = vst [vmem:[%s2 + $0x108] sm:$0xff] %v610
  %675 = vst [vmem:[%s2 + $0x110] sm:$0xf] %v611
  %676 = vst [vmem:[%s2 + $0x114] sm:$0xff] %v612
  %677 = vst [vmem:[%s2 + $0x11c] sm:$0xf] %v613
  %678 = vst [vmem:[%s2 + $0x120] sm:$0xff] %v614
  %679 = vst [vmem:[%s2 + $0x128] sm:$0xf] %v615
  %680 = vst [vmem:[%s2 + $0x12c] sm:$0xff] %v616
  %681 = vst [vmem:[%s2 + $0x134] sm:$0xf] %v617
  %682 = vst [vmem:[%s2 + $0x138] sm:$0xff] %v618
  %683 = vst [vmem:[%s2 + $0x140] sm:$0xf] %v619
  %684 = vst [vmem:[%s2 + $0x144] sm:$0xff] %v620
  %685 = vst [vmem:[%s2 + $0x14c] sm:$0xf] %v621
  %686 = vst [vmem:[%s2 + $0x150] sm:$0xff] %v622
  %687 = vst [vmem:[%s2 + $0x158] sm:$0xf] %v623
  %688 = vst [vmem:[%s2 + $0x15c] sm:$0xff] %v624
  %689 = vst [vmem:[%s2 + $0x164] sm:$0xf] %v625
  %690 = vst [vmem:[%s2 + $0x168] sm:$0xff] %v626
  %691 = vst [vmem:[%s2 + $0x170] sm:$0xf] %v627
  %692 = vst [vmem:[%s2 + $0x174] sm:$0xff] %v628
  %693 = vst [vmem:[%s2 + $0x17c] sm:$0xf] %v629
  // Predicated region
  $region10: #{attention_forward.3} parent=0 // pred_check
    _
  $region11: #{attention_forward.3} parent=0 // pred_check_branch
    %695 = sbr.rel (0) target = $region13
  $region12: #{attention_forward.3} parent=0 // pred_region
    _
  $region13: #{attention_forward.3} parent=0 // pred_fallthru
    _
  // Predicated region
  $region14: #{attention_forward.3} parent=0 // pred_check
    _
  $region15: #{attention_forward.3} parent=0 // pred_check_branch
    %697 = sbr.rel (0) target = $region17
  $region16: #{attention_forward.3} parent=0 // pred_region
    _
  $region17: #{attention_forward.3} parent=0 // pred_fallthru
    _

// kernel: attention_forward.5
$region0: #{attention_forward.5}
  #allocation0 [shape = 'u32[]', space=smem, size = 0x4, offset = 0x4, fixed_abs, tag = 'smem constant byte address 0x4 - core index']
  #allocation1 [shape = 'u32[72,128]{1,0:T(1,128)}', space=vmem, size = 0x9000, scoped, tag = 'internal scratch']
  %s0 = inlined_call_operand.vmem [shape: bf16[256,128], index: 0, kind: input, shape index: {}]
  %s1 = inlined_call_operand.vmem [shape: bf16[128,128], index: 1, kind: input, shape index: {}]
  %s2 = inlined_call_operand.vmem [shape: f32[1,128], index: 2, kind: input, shape index: {}]
  %s3 = inlined_call_operand.vmem [shape: f32[256,128], index: 3, kind: output, shape index: {}]
  %s4 = sld [smem:[#allocation0]]
  $region22: #{attention_forward.5} parent=0
    _
  %s6 = ssub.s32 1, %s4
  %s7 = scalar_select 0, %s6, %s4
  // Predicated region
  $region2: #{attention_forward.5} parent=0 // pred_check
    _
  $region3: #{attention_forward.5} parent=0 // pred_check_branch
    %9 = sbr.rel (0) target = $region5
  $region4: #{attention_forward.5} parent=0 // pred_region
    _
  $region5: #{attention_forward.5} parent=0 // pred_fallthru
    _
  // Predicated region
  $region6: #{attention_forward.5} parent=0 // pred_check
    _
  $region7: #{attention_forward.5} parent=0 // pred_check_branch
    %11 = sbr.rel (0) target = $region9
  $region8: #{attention_forward.5} parent=0 // pred_region
    _
  $region9: #{attention_forward.5} parent=0 // pred_fallthru
    _
  // Predicated region
  $region10: #{attention_forward.5} parent=0 // pred_check
    _
  $region11: #{attention_forward.5} parent=0 // pred_check_branch
    %13 = sbr.rel (0) target = $region13
  $region12: #{attention_forward.5} parent=0 // pred_region
    _
  $region13: #{attention_forward.5} parent=0 // pred_fallthru
    _
  %v14 = vld [vmem:[%s0] sm:$0xf]
  %v15 = vld [vmem:[%s0 + $0x4] sm:$0xf]
  %v16 = vld [vmem:[%s0 + $0x8] sm:$0xf]
  %v17 = vld [vmem:[%s0 + $0xc] sm:$0xf]
  %v18 = vld [vmem:[%s0 + $0x10] sm:$0xf]
  %v19 = vld [vmem:[%s0 + $0x14] sm:$0xf]
  %v20 = vld [vmem:[%s0 + $0x18] sm:$0xf]
  %v21 = vld [vmem:[%s0 + $0x1c] sm:$0xf]
  %v22 = vld [vmem:[%s0 + $0x20] sm:$0xf]
  %v23 = vld [vmem:[%s0 + $0x24] sm:$0xf]
  %v24 = vld [vmem:[%s0 + $0x28] sm:$0xf]
  %v25 = vld [vmem:[%s0 + $0x2c] sm:$0xf]
  %v26 = vld [vmem:[%s0 + $0x30] sm:$0xf]
  %v27 = vld [vmem:[%s0 + $0x34] sm:$0xf]
  %v28 = vld [vmem:[%s0 + $0x38] sm:$0xf]
  %v29 = vld [vmem:[%s0 + $0x3c] sm:$0xf]
  %v30 = vld [vmem:[%s0 + $0x40] sm:$0xf]
  %v31 = vld [vmem:[%s0 + $0x44] sm:$0xf]
  %v32 = vld [vmem:[%s0 + $0x48] sm:$0xf]
  %v33 = vld [vmem:[%s0 + $0x4c] sm:$0xf]
  %v34 = vld [vmem:[%s0 + $0x50] sm:$0xf]
  %v35 = vld [vmem:[%s0 + $0x54] sm:$0xf]
  %v36 = vld [vmem:[%s0 + $0x58] sm:$0xf]
  %v37 = vld [vmem:[%s0 + $0x5c] sm:$0xf]
  %v38 = vld [vmem:[%s0 + $0x60] sm:$0xf]
  %v39 = vld [vmem:[%s0 + $0x64] sm:$0xf]
  %v40 = vld [vmem:[%s0 + $0x68] sm:$0xf]
  %v41 = vld [vmem:[%s0 + $0x6c] sm:$0xf]
  %v42 = vld [vmem:[%s0 + $0x70] sm:$0xf]
  %v43 = vld [vmem:[%s0 + $0x74] sm:$0xf]
  %v44 = vld [vmem:[%s0 + $0x78] sm:$0xf]
  %v45 = vld [vmem:[%s0 + $0x7c] sm:$0xf]
  %v46 = vld [vmem:[%s1] sm:$0xf]
  %v47 = vld [vmem:[%s1 + $0x4] sm:$0xf]
  %v48 = vld [vmem:[%s1 + $0x8] sm:$0xf]
  %v49 = vld [vmem:[%s1 + $0xc] sm:$0xf]
  %v50 = vld [vmem:[%s1 + $0x10] sm:$0xf]
  %v51 = vld [vmem:[%s1 + $0x14] sm:$0xf]
  %v52 = vld [vmem:[%s1 + $0x18] sm:$0xf]
  %v53 = vld [vmem:[%s1 + $0x1c] sm:$0xf]
  %v54 = vld [vmem:[%s1 + $0x20] sm:$0xf]
  %v55 = vld [vmem:[%s1 + $0x24] sm:$0xf]
  %v56 = vld [vmem:[%s1 + $0x28] sm:$0xf]
  %v57 = vld [vmem:[%s1 + $0x2c] sm:$0xf]
  %v58 = vld [vmem:[%s1 + $0x30] sm:$0xf]
  %v59 = vld [vmem:[%s1 + $0x34] sm:$0xf]
  %v60 = vld [vmem:[%s1 + $0x38] sm:$0xf]
  %v61 = vld [vmem:[%s1 + $0x3c] sm:$0xf]
  %v62 = vld [vmem:[%s2] sm:$0x1]
  %v64 = vperm.slane %v62, 0
  %v98 = vunpack.c.l.b16 %v14
  %v99 = vunpack.c.l.b16 %v15
  %v100 = vunpack.c.l.b16 %v16
  %v101 = vunpack.c.l.b16 %v17
  %v102 = vunpack.c.l.b16 %v18
  %v103 = vunpack.c.l.b16 %v19
  %v104 = vunpack.c.l.b16 %v20
  %v105 = vunpack.c.l.b16 %v21
  %v106 = vunpack.c.l.b16 %v22
  %v107 = vunpack.c.l.b16 %v23
  %v108 = vunpack.c.l.b16 %v24
  %v109 = vunpack.c.l.b16 %v25
  %v110 = vunpack.c.l.b16 %v26
  %v111 = vunpack.c.l.b16 %v27
  %v112 = vunpack.c.l.b16 %v28
  %v113 = vunpack.c.l.b16 %v29
  %v114 = vunpack.c.l.b16 %v30
  %v115 = vunpack.c.l.b16 %v31
  %v116 = vunpack.c.l.b16 %v32
  %v117 = vunpack.c.l.b16 %v33
  %v118 = vunpack.c.l.b16 %v34
  %v119 = vunpack.c.l.b16 %v35
  %v120 = vunpack.c.l.b16 %v36
  %v121 = vunpack.c.l.b16 %v37
  %v122 = vunpack.c.l.b16 %v38
  %v123 = vunpack.c.l.b16 %v39
  %v124 = vunpack.c.l.b16 %v40
  %v125 = vunpack.c.l.b16 %v41
  %v126 = vunpack.c.l.b16 %v42
  %v127 = vunpack.c.l.b16 %v43
  %v128 = vunpack.c.l.b16 %v44
  %v129 = vunpack.c.l.b16 %v45
  %v130 = vpack.c.b16 %v99, %v98
  %v131 = vpack.c.b16 %v101, %v100
  %v132 = vpack.c.b16 %v103, %v102
  %v133 = vpack.c.b16 %v105, %v104
  %v134 = vpack.c.b16 %v107, %v106
  %v135 = vpack.c.b16 %v109, %v108
  %v136 = vpack.c.b16 %v111, %v110
  %v137 = vpack.c.b16 %v113, %v112
  %v138 = vpack.c.b16 %v115, %v114
  %v139 = vpack.c.b16 %v117, %v116
  %v140 = vpack.c.b16 %v119, %v118
  %v141 = vpack.c.b16 %v121, %v120
  %v142 = vpack.c.b16 %v123, %v122
  %v143 = vpack.c.b16 %v125, %v124
  %v144 = vpack.c.b16 %v127, %v126
  %v145 = vpack.c.b16 %v129, %v128
  %v178 = vunpack.c.l.b16 %v46
  %v179 = vunpack.c.l.b16 %v47
  %v180 = vunpack.c.l.b16 %v48
  %v181 = vunpack.c.l.b16 %v49
  %v182 = vunpack.c.l.b16 %v50
  %v183 = vunpack.c.l.b16 %v51
  %v184 = vunpack.c.l.b16 %v52
  %v185 = vunpack.c.l.b16 %v53
  %v186 = vunpack.c.l.b16 %v54
  %v187 = vunpack.c.l.b16 %v55
  %v188 = vunpack.c.l.b16 %v56
  %v189 = vunpack.c.l.b16 %v57
  %v190 = vunpack.c.l.b16 %v58
  %v191 = vunpack.c.l.b16 %v59
  %v192 = vunpack.c.l.b16 %v60
  %v193 = vunpack.c.l.b16 %v61
  %v194 = vpack.c.b16 %v179, %v178
  %v195 = vpack.c.b16 %v181, %v180
  %v196 = vpack.c.b16 %v183, %v182
  %v197 = vpack.c.b16 %v185, %v184
  %v198 = vpack.c.b16 %v187, %v186
  %v199 = vpack.c.b16 %v189, %v188
  %v200 = vpack.c.b16 %v191, %v190
  %v201 = vpack.c.b16 %v193, %v192
  %210 = vmatpush.bf16.msra.mxu0 %v201
  %211 = vmatpush.bf16.msra.mxu0 %v200
  %212 = vmatpush.bf16.msra.mxu0 %v199
  %213 = vmatpush.bf16.msra.mxu0 %v198
  %214 = vmatpush.bf16.msra.mxu0 %v197
  %215 = vmatpush.bf16.msra.mxu0 %v196
  %216 = vmatpush.bf16.msra.mxu0 %v195
  %217 = vmatpush.bf16.msra.mxu0 %v194
  %218 = vmatmul.bf16.gmra.mxu0 %v130
  %v219 = vpop.f32.mrf.mxu0
  %v220 = vadd.f32 %v64, %v219
  %v221 = vpop.f32.mrf.mxu0
  %v222 = vadd.f32 %v64, %v221
  %223 = vmatmul.bf16.gmra.mxu0 %v131
  %v224 = vpop.f32.mrf.mxu0
  %v225 = vadd.f32 %v64, %v224
  %v226 = vpop.f32.mrf.mxu0
  %v227 = vadd.f32 %v64, %v226
  %228 = vmatmul.bf16.gmra.mxu0 %v132
  %v229 = vpop.f32.mrf.mxu0
  %v230 = vadd.f32 %v64, %v229
  %v231 = vpop.f32.mrf.mxu0
  %v232 = vadd.f32 %v64, %v231
  %233 = vmatmul.bf16.gmra.mxu0 %v133
  %v234 = vpop.f32.mrf.mxu0
  %v235 = vadd.f32 %v64, %v234
  %v236 = vpop.f32.mrf.mxu0
  %v237 = vadd.f32 %v64, %v236
  %238 = vmatmul.bf16.gmra.mxu0 %v134
  %v239 = vpop.f32.mrf.mxu0
  %v240 = vadd.f32 %v64, %v239
  %v241 = vpop.f32.mrf.mxu0
  %v242 = vadd.f32 %v64, %v241
  %243 = vmatmul.bf16.gmra.mxu0 %v135
  %v244 = vpop.f32.mrf.mxu0
  %v245 = vadd.f32 %v64, %v244
  %v246 = vpop.f32.mrf.mxu0
  %v247 = vadd.f32 %v64, %v246
  %248 = vmatmul.bf16.gmra.mxu0 %v136
  %v249 = vpop.f32.mrf.mxu0
  %v250 = vadd.f32 %v64, %v249
  %v251 = vpop.f32.mrf.mxu0
  %v252 = vadd.f32 %v64, %v251
  %253 = vmatmul.bf16.gmra.mxu0 %v137
  %v254 = vpop.f32.mrf.mxu0
  %v255 = vadd.f32 %v64, %v254
  %v256 = vpop.f32.mrf.mxu0
  %v257 = vadd.f32 %v64, %v256
  %258 = vmatmul.bf16.gmra.mxu0 %v138
  %v259 = vpop.f32.mrf.mxu0
  %v260 = vadd.f32 %v64, %v259
  %v261 = vpop.f32.mrf.mxu0
  %v262 = vadd.f32 %v64, %v261
  %263 = vmatmul.bf16.gmra.mxu0 %v139
  %v264 = vpop.f32.mrf.mxu0
  %v265 = vadd.f32 %v64, %v264
  %v266 = vpop.f32.mrf.mxu0
  %v267 = vadd.f32 %v64, %v266
  %268 = vmatmul.bf16.gmra.mxu0 %v140
  %v269 = vpop.f32.mrf.mxu0
  %v270 = vadd.f32 %v64, %v269
  %v271 = vpop.f32.mrf.mxu0
  %v272 = vadd.f32 %v64, %v271
  %273 = vmatmul.bf16.gmra.mxu0 %v141
  %v274 = vpop.f32.mrf.mxu0
  %v275 = vadd.f32 %v64, %v274
  %v276 = vpop.f32.mrf.mxu0
  %v277 = vadd.f32 %v64, %v276
  %278 = vmatmul.bf16.gmra.mxu0 %v142
  %v279 = vpop.f32.mrf.mxu0
  %v280 = vadd.f32 %v64, %v279
  %v281 = vpop.f32.mrf.mxu0
  %v282 = vadd.f32 %v64, %v281
  %283 = vmatmul.bf16.gmra.mxu0 %v143
  %v284 = vpop.f32.mrf.mxu0
  %v285 = vadd.f32 %v64, %v284
  %v286 = vpop.f32.mrf.mxu0
  %v287 = vadd.f32 %v64, %v286
  %288 = vmatmul.bf16.gmra.mxu0 %v144
  %v289 = vpop.f32.mrf.mxu0
  %v290 = vadd.f32 %v64, %v289
  %v291 = vpop.f32.mrf.mxu0
  %v292 = vadd.f32 %v64, %v291
  %293 = vmatmul.bf16.gmra.mxu0 %v145
  %v294 = vpop.f32.mrf.mxu0
  %v295 = vadd.f32 %v64, %v294
  %v296 = vpop.f32.mrf.mxu0
  %v297 = vadd.f32 %v64, %v296
  %298 = vdwg.mxu0
  %299 = vst [vmem:[%s3] sm:$0xff] %v220
  %300 = vst [vmem:[%s3 + $0x8] sm:$0xff] %v222
  %301 = vst [vmem:[%s3 + $0x10] sm:$0xff] %v225
  %302 = vst [vmem:[%s3 + $0x18] sm:$0xff] %v227
  %303 = vst [vmem:[%s3 + $0x20] sm:$0xff] %v230
  %304 = vst [vmem:[%s3 + $0x28] sm:$0xff] %v232
  %305 = vst [vmem:[%s3 + $0x30] sm:$0xff] %v235
  %306 = vst [vmem:[%s3 + $0x38] sm:$0xff] %v237
  %307 = vst [vmem:[%s3 + $0x40] sm:$0xff] %v240
  %308 = vst [vmem:[%s3 + $0x48] sm:$0xff] %v242
  %309 = vst [vmem:[%s3 + $0x50] sm:$0xff] %v245
  %310 = vst [vmem:[%s3 + $0x58] sm:$0xff] %v247
  %311 = vst [vmem:[%s3 + $0x60] sm:$0xff] %v250
  %312 = vst [vmem:[%s3 + $0x68] sm:$0xff] %v252
  %313 = vst [vmem:[%s3 + $0x70] sm:$0xff] %v255
  %314 = vst [vmem:[%s3 + $0x78] sm:$0xff] %v257
  %315 = vst [vmem:[%s3 + $0x80] sm:$0xff] %v260
  %316 = vst [vmem:[%s3 + $0x88] sm:$0xff] %v262
  %317 = vst [vmem:[%s3 + $0x90] sm:$0xff] %v265
  %318 = vst [vmem:[%s3 + $0x98] sm:$0xff] %v267
  %319 = vst [vmem:[%s3 + $0xa0] sm:$0xff] %v270
  %320 = vst [vmem:[%s3 + $0xa8] sm:$0xff] %v272
  %321 = vst [vmem:[%s3 + $0xb0] sm:$0xff] %v275
  %322 = vst [vmem:[%s3 + $0xb8] sm:$0xff] %v277
  %323 = vst [vmem:[%s3 + $0xc0] sm:$0xff] %v280
  %324 = vst [vmem:[%s3 + $0xc8] sm:$0xff] %v282
  %325 = vst [vmem:[%s3 + $0xd0] sm:$0xff] %v285
  %326 = vst [vmem:[%s3 + $0xd8] sm:$0xff] %v287
  %327 = vst [vmem:[%s3 + $0xe0] sm:$0xff] %v290
  %328 = vst [vmem:[%s3 + $0xe8] sm:$0xff] %v292
  %329 = vst [vmem:[%s3 + $0xf0] sm:$0xff] %v295
  %330 = vst [vmem:[%s3 + $0xf8] sm:$0xff] %v297
  // Predicated region
  $region14: #{attention_forward.5} parent=0 // pred_check
    _
  $region15: #{attention_forward.5} parent=0 // pred_check_branch
    %332 = sbr.rel (0) target = $region17
  $region16: #{attention_forward.5} parent=0 // pred_region
    _
  $region17: #{attention_forward.5} parent=0 // pred_fallthru
    _
  // Predicated region
  $region18: #{attention_forward.5} parent=0 // pred_check
    _
  $region19: #{attention_forward.5} parent=0 // pred_check_branch
    %334 = sbr.rel (0) target = $region21
  $region20: #{attention_forward.5} parent=0 // pred_region
    _
  $region21: #{attention_forward.5} parent=0 // pred_fallthru
    _

// kernel: attention_forward.4
$region0: #{attention_forward.4}
  #allocation0 [shape = 'u32[]', space=smem, size = 0x4, offset = 0x4, fixed_abs, tag = 'smem constant byte address 0x4 - core index']
  #allocation1 [shape = 'u32[72,128]{1,0:T(1,128)}', space=vmem, size = 0x9000, scoped, tag = 'internal scratch']
  %s0 = inlined_call_operand.vmem [shape: bf16[2,16,384], index: 0, kind: input, shape index: {}, may-alias: {0,1,2}]
  %s1 = inlined_call_operand.vmem [shape: bf16[2,16,384], index: 1, kind: input, shape index: {}, may-alias: {0,1,2}]
  %s2 = inlined_call_operand.vmem [shape: bf16[2,16,384], index: 2, kind: input, shape index: {}, may-alias: {0,1,2}]
  %s3 = inlined_call_operand.vmem [shape: bf16[2,16,128], index: 3, kind: output, shape index: {}]
  %s4 = sld [smem:[#allocation0]]
  $region168: #{attention_forward.4} parent=0
    _
  %s6 = ssub.s32 1, %s4
  %s7 = scalar_select 0, %s6, %s4
  $region1: #{attention_forward.4} parent=0
    #allocation2 [shape = 'u8[8192]{0}', space=vmem, size = 0x2000, scoped, tag = 'input window, operand 0']
    #allocation3 [shape = 'u8[8192]{0}', space=vmem, size = 0x2000, scoped, tag = 'input window, operand 1']
    #allocation4 [shape = 'u8[8192]{0}', space=vmem, size = 0x2000, scoped, tag = 'input window, operand 2']
    loop: start=0, step=1, limit=4
    $region2: #{attention_forward.4} parent=1 // loop_pre_header
      _
    $region3: #{attention_forward.4} parent=1 // loop_header
      %s9 = sphi 0, %s13
      %p10 = scmp.ge.s32.totalorder %s9, 4
      %s16 = sphi 0, %s28
      %s17 = sphi 0, %s24
      %s18 = sphi 0, %s16
      %s19 = sphi 0, %s17
      %s20 = sphi 0, %s18
      %s21 = sphi 0, %s19
      %s33 = sphi 0, %s35
      %s36 = sphi 0, %s33
      %s37 = sphi 0, %s36
      %s53 = sphi 0, %s37
      %s63 = sphi 0, %s65
      %s66 = sphi 0, %s63
      %s67 = sphi 0, %s66
      %s83 = sphi 0, %s67
      %s93 = sphi 0, %s95
      %s96 = sphi 0, %s93
      %s97 = sphi 0, %s96
      %s113 = sphi 0, %s97
      %s121 = sphi 0, %s123
      %s124 = sphi 0, %s121
      %s125 = sphi 0, %s124
      %s141 = sphi 0, %s125
    $region4: #{attention_forward.4} parent=1 // loop_header_branch
      %12 = sbr.rel (%p10) target = $region8
    $region5: #{attention_forward.4} parent=1 // loop_body
      %s14 = ssub.s32 %s9, 1
      %s15 = ssub.s32 %s9, 2
      %s22 = sadd.s32 1, %s17
      %p23 = scmp.ge.s32.totalorder %s22, 1
      %s24 = scalar_select %p23, 0, %s22
      %s25 = sadd.s32 1, %s16
      %s26 = scalar_select %p23, %s25, %s16
      %p27 = scmp.ge.s32.totalorder %s26, 2
      %s28 = scalar_select %p27, 0, %s26
      %s29 = ssub.s32 %s16, %s28
      %s30 = ssub.s32 %s17, %s24
      %s31 = sor.u32 %s29, %s30
      %p32 = scmp.eq.s32.totalorder %s31, 0
      %s34 = sadd.s32 %s33, 1
      %s35 = scalar_select %p32, %s33, %s34
      %p38 = pneg %p32
      %p39 = scmp.eq.s32.totalorder %s9, 1
      %p40 = por %p38, %p39
      %p41 = scmp.ne.s32.totalorder %s33, %s36
      %p42 = scmp.eq.s32.totalorder %s9, 0
      %p43 = por %p41, %p42
      %p44 = scmp.ne.s32.totalorder %s33, %s36
      %p45 = scmp.eq.s32.totalorder %s14, 1
      %p46 = por %p44, %p45
      %p47 = scmp.ne.s32.totalorder %s36, %s37
      %p48 = scmp.eq.s32.totalorder %s14, 0
      %p49 = por %p47, %p48
      %p50 = scmp.ne.s32.totalorder %s36, %s37
      %p51 = scmp.eq.s32.totalorder %s15, 1
      %p52 = por %p50, %p51
      %p54 = scmp.ne.s32.totalorder %s37, %s53
      %p55 = scmp.eq.s32.totalorder %s15, 0
      %p56 = por %p54, %p55
      %s57 = sadd.s32 %s17, 1
      %s58 = sadd.s32 %s24, 1
      %s59 = ssub.s32 %s16, %s28
      %s60 = ssub.s32 %s57, %s58
      %s61 = sor.u32 %s59, %s60
      %p62 = scmp.eq.s32.totalorder %s61, 0
      %s64 = sadd.s32 %s63, 1
      %s65 = scalar_select %p62, %s63, %s64
      %p68 = pneg %p62
      %p69 = scmp.eq.s32.totalorder %s9, 1
      %p70 = por %p68, %p69
      %p71 = scmp.ne.s32.totalorder %s63, %s66
      %p72 = scmp.eq.s32.totalorder %s9, 0
      %p73 = por %p71, %p72
      %p74 = scmp.ne.s32.totalorder %s63, %s66
      %p75 = scmp.eq.s32.totalorder %s14, 1
      %p76 = por %p74, %p75
      %p77 = scmp.ne.s32.totalorder %s66, %s67
      %p78 = scmp.eq.s32.totalorder %s14, 0
      %p79 = por %p77, %p78
      %p80 = scmp.ne.s32.totalorder %s66, %s67
      %p81 = scmp.eq.s32.totalorder %s15, 1
      %p82 = por %p80, %p81
      %p84 = scmp.ne.s32.totalorder %s67, %s83
      %p85 = scmp.eq.s32.totalorder %s15, 0
      %p86 = por %p84, %p85
      %s87 = sadd.s32 %s17, 2
      %s88 = sadd.s32 %s24, 2
      %s89 = ssub.s32 %s16, %s28
      %s90 = ssub.s32 %s87, %s88
      %s91 = sor.u32 %s89, %s90
      %p92 = scmp.eq.s32.totalorder %s91, 0
      %s94 = sadd.s32 %s93, 1
      %s95 = scalar_select %p92, %s93, %s94
      %p98 = pneg %p92
      %p99 = scmp.eq.s32.totalorder %s9, 1
      %p100 = por %p98, %p99
      %p101 = scmp.ne.s32.totalorder %s93, %s96
      %p102 = scmp.eq.s32.totalorder %s9, 0
      %p103 = por %p101, %p102
      %p104 = scmp.ne.s32.totalorder %s93, %s96
      %p105 = scmp.eq.s32.totalorder %s14, 1
      %p106 = por %p104, %p105
      %p107 = scmp.ne.s32.totalorder %s96, %s97
      %p108 = scmp.eq.s32.totalorder %s14, 0
      %p109 = por %p107, %p108
      %p110 = scmp.ne.s32.totalorder %s96, %s97
      %p111 = scmp.eq.s32.totalorder %s15, 1
      %p112 = por %p110, %p111
      %p114 = scmp.ne.s32.totalorder %s97, %s113
      %p115 = scmp.eq.s32.totalorder %s15, 0
      %p116 = por %p114, %p115
      %s117 = ssub.s32 %s16, %s28
      %s118 = ssub.s32 %s17, %s24
      %s119 = sor.u32 %s117, %s118
      %p120 = scmp.eq.s32.totalorder %s119, 0
      %s122 = sadd.s32 %s121, 1
      %s123 = scalar_select %p120, %s121, %s122
      %p126 = pneg %p120
      %p127 = scmp.eq.s32.totalorder %s9, 1
      %p128 = por %p126, %p127
      %p129 = scmp.ne.s32.totalorder %s121, %s124
      %p130 = scmp.eq.s32.totalorder %s9, 0
      %p131 = por %p129, %p130
      %p132 = scmp.ne.s32.totalorder %s121, %s124
      %p133 = scmp.eq.s32.totalorder %s14, 1
      %p134 = por %p132, %p133
      %p135 = scmp.ne.s32.totalorder %s124, %s125
      %p136 = scmp.eq.s32.totalorder %s14, 0
      %p137 = por %p135, %p136
      %p138 = scmp.ne.s32.totalorder %s124, %s125
      %p139 = scmp.eq.s32.totalorder %s15, 1
      %p140 = por %p138, %p139
      %p142 = scmp.ne.s32.totalorder %s125, %s141
      %p143 = scmp.eq.s32.totalorder %s15, 0
      %p144 = por %p142, %p143
      %p145 = scmp.le.s32.totalorder 1, %s9
      %p146 = scmp.lt.s32.totalorder %s9, 3
      %p147 = pnand %p145, %p146
      %p148 = pneg %p147
      // Predicated region
      $region9: #{attention_forward.4} parent=5 // pred_check
        _
      $region10: #{attention_forward.4} parent=5 // pred_check_branch
        %150 = sbr.rel (%p147) target = $region12
      $region11: #{attention_forward.4} parent=5 // pred_region
        %s151 = ssub.s32 %s9, 1
      $region12: #{attention_forward.4} parent=5 // pred_fallthru
        _
      %p152 = scmp.lt.s32.totalorder %s9, 2
      // Predicated region
      $region13: #{attention_forward.4} parent=5 // pred_check
        %p153 = pneg %p152
      $region14: #{attention_forward.4} parent=5 // pred_check_branch
        %155 = sbr.rel (%p153) target = $region16
      $region15: #{attention_forward.4} parent=5 // pred_region
        // Predicated region
        $region17: #{attention_forward.4} parent=15 // pred_check
          %p156 = pneg %p43
        $region18: #{attention_forward.4} parent=15 // pred_check_branch
          %158 = sbr.rel (%p156) target = $region20
        $region19: #{attention_forward.4} parent=15 // pred_region
          %s159 = sand.u32 %s33, 1
          %s160 = sand.u32 %s33, 1
          %s161 = smul.addr %s160, 8
          %s162 = scalar_lea.vmem [#allocation2], %s161
          %s163 = smul.addr %s16, 6
          %s164 = sadd.s32 %s17, %s163
          %s165 = smul.addr %s164, 4
          %s166 = scalar_lea.vmem %s0, %s165
          // Predicated region
          $region21: #{attention_forward.4} parent=19 // pred_check
            _
          $region22: #{attention_forward.4} parent=19 // pred_check_branch
            %168 = sbr.rel (0) target = $region24
          $region23: #{attention_forward.4} parent=19 // pred_region
            // Predicated region
            $region25: #{attention_forward.4} parent=23 // pred_check
              _
            $region26: #{attention_forward.4} parent=23 // pred_check_branch
              %170 = sbr.rel target = $region28
            $region27: #{attention_forward.4} parent=23 // pred_region
              // Predicated region
              $region40: #{attention_forward.4} parent=27 // pred_check
                _
              $region41: #{attention_forward.4} parent=27 // pred_check_branch
                %188 = sbr.rel (0) target = $region43
              $region42: #{attention_forward.4} parent=27 // pred_region
                loop: start=0, step=1, limit=1
                $region44: #{attention_forward.4} parent=42 // loop_pre_header
                  _
                $region45: #{attention_forward.4} parent=42 // loop_header
                  %s190 = sphi 0, %s194
                  %p191 = scmp.ge.s32.totalorder %s190, 1
                  %s195 = sphi %s166, %s166
                  %s196 = sphi %s162, %s162
                $region46: #{attention_forward.4} parent=42 // loop_header_branch
                  %193 = sbr.rel (%p191) target = $region50
                $region47: #{attention_forward.4} parent=42 // loop_body
                  _
                $region48: #{attention_forward.4} parent=42 // loop_footer
                  %s194 = sadd.s32 1, %s190
                $region49: #{attention_forward.4} parent=42 // loop_footer_branch
                  %189 = sbr.rel target = $region45
                $region50: #{attention_forward.4} parent=42 // loop_exit
                  _
                %s198 = ssub.s32 16, 1
                loop: start=0, step=1, limit=1
                $region51: #{attention_forward.4} parent=42 // loop_pre_header
                  _
                $region52: #{attention_forward.4} parent=42 // loop_header
                  %s200 = sphi 0, %s204
                  %p201 = scmp.ge.s32.totalorder %s200, 1
                  %s205 = sphi %s166, %s166
                  %s206 = sphi %s162, %s162
                $region53: #{attention_forward.4} parent=42 // loop_header_branch
                  %203 = sbr.rel (%p201) target = $region57
                $region54: #{attention_forward.4} parent=42 // loop_body
                  %v207 = vld [vmem:[%s205] sm:%s198]
                  %208 = vst [vmem:[%s206] sm:%s198] %v207
                  %v209 = vld [vmem:[%s205 + $0xc] sm:%s198]
                  %210 = vst [vmem:[%s206 + $0x4] sm:%s198] %v209
                $region55: #{attention_forward.4} parent=42 // loop_footer
                  %s204 = sadd.s32 1, %s200
                $region56: #{attention_forward.4} parent=42 // loop_footer_branch
                  %199 = sbr.rel target = $region52
                $region57: #{attention_forward.4} parent=42 // loop_exit
                  _
              $region43: #{attention_forward.4} parent=27 // pred_fallthru
                _
            $region28: #{attention_forward.4} parent=23 // pred_fallthru
              _
            // Predicated region
            $region29: #{attention_forward.4} parent=23 // pred_check
              _
            $region30: #{attention_forward.4} parent=23 // pred_check_branch
              %172 = sbr.rel (0) target = $region32
            $region31: #{attention_forward.4} parent=23 // pred_region
              %s174 = ssub.s32 16, 1
              loop: start=0, step=1, limit=1
              $region33: #{attention_forward.4} parent=31 // loop_pre_header
                _
              $region34: #{attention_forward.4} parent=31 // loop_header
                %s176 = sphi 0, %s180
                %p177 = scmp.ge.s32.totalorder %s176, 1
                %s181 = sphi %s166, %s166
                %s182 = sphi %s162, %s162
              $region35: #{attention_forward.4} parent=31 // loop_header_branch
                %179 = sbr.rel (%p177) target = $region39
              $region36: #{attention_forward.4} parent=31 // loop_body
                %v183 = vld [vmem:[%s181] sm:%s174]
                %184 = vst [vmem:[%s182] sm:%s174] %v183
                %v185 = vld [vmem:[%s181 + $0xc] sm:%s174]
                %186 = vst [vmem:[%s182 + $0x4] sm:%s174] %v185
              $region37: #{attention_forward.4} parent=31 // loop_footer
                %s180 = sadd.s32 1, %s176
              $region38: #{attention_forward.4} parent=31 // loop_footer_branch
                %175 = sbr.rel target = $region34
              $region39: #{attention_forward.4} parent=31 // loop_exit
                _
            $region32: #{attention_forward.4} parent=23 // pred_fallthru
              _
          $region24: #{attention_forward.4} parent=19 // pred_fallthru
            _
          %211 = vnop
        $region20: #{attention_forward.4} parent=15 // pred_fallthru
          _
        // Predicated region
        $region58: #{attention_forward.4} parent=15 // pred_check
          %p212 = pneg %p73
        $region59: #{attention_forward.4} parent=15 // pred_check_branch
          %214 = sbr.rel (%p212) target = $region61
        $region60: #{attention_forward.4} parent=15 // pred_region
          %s215 = sand.u32 %s63, 1
          %s216 = sand.u32 %s63, 1
          %s217 = smul.addr %s216, 8
          %s218 = scalar_lea.vmem [#allocation3], %s217
          %s219 = sadd.s32 %s17, 1
          %s220 = smul.addr %s16, 6
          %s221 = sadd.s32 %s219, %s220
          %s222 = smul.addr %s221, 4
          %s223 = scalar_lea.vmem %s1, %s222
          // Predicated region
          $region62: #{attention_forward.4} parent=60 // pred_check
            _
          $region63: #{attention_forward.4} parent=60 // pred_check_branch
            %225 = sbr.rel (0) target = $region65
          $region64: #{attention_forward.4} parent=60 // pred_region
            // Predicated region
            $region66: #{attention_forward.4} parent=64 // pred_check
              _
            $region67: #{attention_forward.4} parent=64 // pred_check_branch
              %227 = sbr.rel target = $region69
            $region68: #{attention_forward.4} parent=64 // pred_region
              // Predicated region
              $region81: #{attention_forward.4} parent=68 // pred_check
                _
              $region82: #{attention_forward.4} parent=68 // pred_check_branch
                %245 = sbr.rel (0) target = $region84
              $region83: #{attention_forward.4} parent=68 // pred_region
                loop: start=0, step=1, limit=1
                $region85: #{attention_forward.4} parent=83 // loop_pre_header
                  _
                $region86: #{attention_forward.4} parent=83 // loop_header
                  %s247 = sphi 0, %s251
                  %p248 = scmp.ge.s32.totalorder %s247, 1
                  %s252 = sphi %s223, %s223
                  %s253 = sphi %s218, %s218
                $region87: #{attention_forward.4} parent=83 // loop_header_branch
                  %250 = sbr.rel (%p248) target = $region91
                $region88: #{attention_forward.4} parent=83 // loop_body
                  _
                $region89: #{attention_forward.4} parent=83 // loop_footer
                  %s251 = sadd.s32 1, %s247
                $region90: #{attention_forward.4} parent=83 // loop_footer_branch
                  %246 = sbr.rel target = $region86
                $region91: #{attention_forward.4} parent=83 // loop_exit
                  _
                %s255 = ssub.s32 16, 1
                loop: start=0, step=1, limit=1
                $region92: #{attention_forward.4} parent=83 // loop_pre_header
                  _
                $region93: #{attention_forward.4} parent=83 // loop_header
                  %s257 = sphi 0, %s261
                  %p258 = scmp.ge.s32.totalorder %s257, 1
                  %s262 = sphi %s223, %s223
                  %s263 = sphi %s218, %s218
                $region94: #{attention_forward.4} parent=83 // loop_header_branch
                  %260 = sbr.rel (%p258) target = $region98
                $region95: #{attention_forward.4} parent=83 // loop_body
                  %v264 = vld [vmem:[%s262] sm:%s255]
                  %265 = vst [vmem:[%s263] sm:%s255] %v264
                  %v266 = vld [vmem:[%s262 + $0xc] sm:%s255]
                  %267 = vst [vmem:[%s263 + $0x4] sm:%s255] %v266
                $region96: #{attention_forward.4} parent=83 // loop_footer
                  %s261 = sadd.s32 1, %s257
                $region97: #{attention_forward.4} parent=83 // loop_footer_branch
                  %256 = sbr.rel target = $region93
                $region98: #{attention_forward.4} parent=83 // loop_exit
                  _
              $region84: #{attention_forward.4} parent=68 // pred_fallthru
                _
            $region69: #{attention_forward.4} parent=64 // pred_fallthru
              _
            // Predicated region
            $region70: #{attention_forward.4} parent=64 // pred_check
              _
            $region71: #{attention_forward.4} parent=64 // pred_check_branch
              %229 = sbr.rel (0) target = $region73
            $region72: #{attention_forward.4} parent=64 // pred_region
              %s231 = ssub.s32 16, 1
              loop: start=0, step=1, limit=1
              $region74: #{attention_forward.4} parent=72 // loop_pre_header
                _
              $region75: #{attention_forward.4} parent=72 // loop_header
                %s233 = sphi 0, %s237
                %p234 = scmp.ge.s32.totalorder %s233, 1
                %s238 = sphi %s223, %s223
                %s239 = sphi %s218, %s218
              $region76: #{attention_forward.4} parent=72 // loop_header_branch
                %236 = sbr.rel (%p234) target = $region80
              $region77: #{attention_forward.4} parent=72 // loop_body
                %v240 = vld [vmem:[%s238] sm:%s231]
                %241 = vst [vmem:[%s239] sm:%s231] %v240
                %v242 = vld [vmem:[%s238 + $0xc] sm:%s231]
                %243 = vst [vmem:[%s239 + $0x4] sm:%s231] %v242
              $region78: #{attention_forward.4} parent=72 // loop_footer
                %s237 = sadd.s32 1, %s233
              $region79: #{attention_forward.4} parent=72 // loop_footer_branch
                %232 = sbr.rel target = $region75
              $region80: #{attention_forward.4} parent=72 // loop_exit
                _
            $region73: #{attention_forward.4} parent=64 // pred_fallthru
              _
          $region65: #{attention_forward.4} parent=60 // pred_fallthru
            _
          %268 = vnop
        $region61: #{attention_forward.4} parent=15 // pred_fallthru
          _
        // Predicated region
        $region99: #{attention_forward.4} parent=15 // pred_check
          %p269 = pneg %p103
        $region100: #{attention_forward.4} parent=15 // pred_check_branch
          %271 = sbr.rel (%p269) target = $region102
        $region101: #{attention_forward.4} parent=15 // pred_region
          %s272 = sand.u32 %s93, 1
          %s273 = sand.u32 %s93, 1
          %s274 = smul.addr %s273, 8
          %s275 = scalar_lea.vmem [#allocation4], %s274
          %s276 = sadd.s32 %s17, 2
          %s277 = smul.addr %s16, 6
          %s278 = sadd.s32 %s276, %s277
          %s279 = smul.addr %s278, 4
          %s280 = scalar_lea.vmem %s2, %s279
          // Predicated region
          $region103: #{attention_forward.4} parent=101 // pred_check
            _
          $region104: #{attention_forward.4} parent=101 // pred_check_branch
            %282 = sbr.rel (0) target = $region106
          $region105: #{attention_forward.4} parent=101 // pred_region
            // Predicated region
            $region107: #{attention_forward.4} parent=105 // pred_check
              _
            $region108: #{attention_forward.4} parent=105 // pred_check_branch
              %284 = sbr.rel target = $region110
            $region109: #{attention_forward.4} parent=105 // pred_region
              // Predicated region
              $region122: #{attention_forward.4} parent=109 // pred_check
                _
              $region123: #{attention_forward.4} parent=109 // pred_check_branch
                %302 = sbr.rel (0) target = $region125
              $region124: #{attention_forward.4} parent=109 // pred_region
                loop: start=0, step=1, limit=1
                $region126: #{attention_forward.4} parent=124 // loop_pre_header
                  _
                $region127: #{attention_forward.4} parent=124 // loop_header
                  %s304 = sphi 0, %s308
                  %p305 = scmp.ge.s32.totalorder %s304, 1
                  %s309 = sphi %s280, %s280
                  %s310 = sphi %s275, %s275
                $region128: #{attention_forward.4} parent=124 // loop_header_branch
                  %307 = sbr.rel (%p305) target = $region132
                $region129: #{attention_forward.4} parent=124 // loop_body
                  _
                $region130: #{attention_forward.4} parent=124 // loop_footer
                  %s308 = sadd.s32 1, %s304
                $region131: #{attention_forward.4} parent=124 // loop_footer_branch
                  %303 = sbr.rel target = $region127
                $region132: #{attention_forward.4} parent=124 // loop_exit
                  _
                %s312 = ssub.s32 16, 1
                loop: start=0, step=1, limit=1
                $region133: #{attention_forward.4} parent=124 // loop_pre_header
                  _
                $region134: #{attention_forward.4} parent=124 // loop_header
                  %s314 = sphi 0, %s318
                  %p315 = scmp.ge.s32.totalorder %s314, 1
                  %s319 = sphi %s280, %s280
                  %s320 = sphi %s275, %s275
                $region135: #{attention_forward.4} parent=124 // loop_header_branch
                  %317 = sbr.rel (%p315) target = $region139
                $region136: #{attention_forward.4} parent=124 // loop_body
                  %v321 = vld [vmem:[%s319] sm:%s312]
                  %322 = vst [vmem:[%s320] sm:%s312] %v321
                  %v323 = vld [vmem:[%s319 + $0xc] sm:%s312]
                  %324 = vst [vmem:[%s320 + $0x4] sm:%s312] %v323
                $region137: #{attention_forward.4} parent=124 // loop_footer
                  %s318 = sadd.s32 1, %s314
                $region138: #{attention_forward.4} parent=124 // loop_footer_branch
                  %313 = sbr.rel target = $region134
                $region139: #{attention_forward.4} parent=124 // loop_exit
                  _
              $region125: #{attention_forward.4} parent=109 // pred_fallthru
                _
            $region110: #{attention_forward.4} parent=105 // pred_fallthru
              _
            // Predicated region
            $region111: #{attention_forward.4} parent=105 // pred_check
              _
            $region112: #{attention_forward.4} parent=105 // pred_check_branch
              %286 = sbr.rel (0) target = $region114
            $region113: #{attention_forward.4} parent=105 // pred_region
              %s288 = ssub.s32 16, 1
              loop: start=0, step=1, limit=1
              $region115: #{attention_forward.4} parent=113 // loop_pre_header
                _
              $region116: #{attention_forward.4} parent=113 // loop_header
                %s290 = sphi 0, %s294
                %p291 = scmp.ge.s32.totalorder %s290, 1
                %s295 = sphi %s280, %s280
                %s296 = sphi %s275, %s275
              $region117: #{attention_forward.4} parent=113 // loop_header_branch
                %293 = sbr.rel (%p291) target = $region121
              $region118: #{attention_forward.4} parent=113 // loop_body
                %v297 = vld [vmem:[%s295] sm:%s288]
                %298 = vst [vmem:[%s296] sm:%s288] %v297
                %v299 = vld [vmem:[%s295 + $0xc] sm:%s288]
                %300 = vst [vmem:[%s296 + $0x4] sm:%s288] %v299
              $region119: #{attention_forward.4} parent=113 // loop_footer
                %s294 = sadd.s32 1, %s290
              $region120: #{attention_forward.4} parent=113 // loop_footer_branch
                %289 = sbr.rel target = $region116
              $region121: #{attention_forward.4} parent=113 // loop_exit
                _
            $region114: #{attention_forward.4} parent=105 // pred_fallthru
              _
          $region106: #{attention_forward.4} parent=101 // pred_fallthru
            _
          %325 = vnop
        $region102: #{attention_forward.4} parent=15 // pred_fallthru
          _
      $region16: #{attention_forward.4} parent=5 // pred_fallthru
        _
      %p326 = scmp.le.s32.totalorder 1, %s9
      %p327 = scmp.lt.s32.totalorder %s9, 3
      %p328 = pnand %p326, %p327
      %p329 = pneg %p328
      // Predicated region
      $region140: #{attention_forward.4} parent=5 // pred_check
        _
      $region141: #{attention_forward.4} parent=5 // pred_check_branch
        %331 = sbr.rel (%p328) target = $region143
      $region142: #{attention_forward.4} parent=5 // pred_region
        %s332 = ssub.s32 %s9, 1
        %s333 = sand.u32 %s36, 1
        %s334 = sand.u32 %s36, 1
        %s335 = smul.addr %s334, 8
        %s336 = scalar_lea.vmem [#allocation2], %s335
        // Predicated region
        $region144: #{attention_forward.4} parent=142 // pred_check
          %p337 = pneg %p49
        $region145: #{attention_forward.4} parent=142 // pred_check_branch
          %339 = sbr.rel (%p337) target = $region147
        $region146: #{attention_forward.4} parent=142 // pred_region
          _
        $region147: #{attention_forward.4} parent=142 // pred_fallthru
          _
        %s340 = sand.u32 %s66, 1
        %s341 = sand.u32 %s66, 1
        %s342 = smul.addr %s341, 8
        %s343 = scalar_lea.vmem [#allocation3], %s342
        // Predicated region
        $region148: #{attention_forward.4} parent=142 // pred_check
          %p344 = pneg %p79
        $region149: #{attention_forward.4} parent=142 // pred_check_branch
          %346 = sbr.rel (%p344) target = $region151
        $region150: #{attention_forward.4} parent=142 // pred_region
          _
        $region151: #{attention_forward.4} parent=142 // pred_fallthru
          _
        %s347 = sand.u32 %s96, 1
        %s348 = sand.u32 %s96, 1
        %s349 = smul.addr %s348, 8
        %s350 = scalar_lea.vmem [#allocation4], %s349
        // Predicated region
        $region152: #{attention_forward.4} parent=142 // pred_check
          %p351 = pneg %p109
        $region153: #{attention_forward.4} parent=142 // pred_check_branch
          %353 = sbr.rel (%p351) target = $region155
        $region154: #{attention_forward.4} parent=142 // pred_region
          _
        $region155: #{attention_forward.4} parent=142 // pred_fallthru
          _
        %s354 = sand.u32 %s36, 1
        %s355 = sand.u32 %s36, 1
        %s356 = smul.addr %s355, 8
        %s357 = scalar_lea.vmem [#allocation2], %s356
        %p358 = pneg %p49
        %p359 = pneg %p46
        %s360 = sand.u32 %s66, 1
        %s361 = sand.u32 %s66, 1
        %s362 = smul.addr %s361, 8
        %s363 = scalar_lea.vmem [#allocation3], %s362
        %p364 = pneg %p79
        %p365 = pneg %p76
        %s366 = sand.u32 %s96, 1
        %s367 = sand.u32 %s96, 1
        %s368 = smul.addr %s367, 8
        %s369 = scalar_lea.vmem [#allocation4], %s368
        %p370 = pneg %p109
        %p371 = pneg %p106
        %p372 = pneg %p137
        %p373 = pneg %p134
        %p374 = scmp.lt.s32.totalorder %s18, 1
        %s375 = scalar_select %p374, %s18, 1
        %p376 = scmp.lt.s32.totalorder %s19, 0
        %s377 = scalar_select %p376, %s19, 0
        %s378 = smul.addr %s375, 2
        %s379 = sadd.s32 %s377, %s378
        %s380 = smul.addr %s379, 4
        %s381 = scalar_lea.vmem %s3, %s380
        %s382 = sadd.s32 %s19, 1
        %s383 = sadd.s32 %s19, 2
        %p384 = scmp.lt.s32.totalorder %s18, 1
        %s385 = scalar_select %p384, %s18, 1
        %p386 = scmp.lt.s32.totalorder %s19, 0
        %s387 = scalar_select %p386, %s19, 0
        %s388 = smul.addr %s385, 2
        %s389 = sadd.s32 %s387, %s388
        %s390 = smul.addr %s389, 4
        %s391 = scalar_lea.vmem %s3, %s390
        %v393 = vld [vmem:[%s336] sm:$0xf]
        %v394 = vld [vmem:[%s336 + $0x4] sm:$0xf]
        %v395 = vld [vmem:[%s343] sm:$0xf]
        %v396 = vld [vmem:[%s343 + $0x4] sm:$0xf]
        %v397 = vld [vmem:[%s350] sm:$0xf]
        %v398 = vld [vmem:[%s350 + $0x4] sm:$0xf]
        %v401 = vunpack.c.l.b16 %v393
        %v402 = vunpack.c.l.b16 %v394
        %v403 = vpack.c.b16 %v402, %v401
        %v406 = vunpack.c.l.b16 %v395
        %v407 = vunpack.c.l.b16 %v396
        %v408 = vpack.c.b16 %v407, %v406
        %vm409 = vcmask 130048
        %v411 = vsel %vm409, %v403, 0
        %v414 = vsel %vm409, %v408, 0
        %416 = vmatpush.bf16.xpose.msra.mxu0 0
        %417 = vmatpush.bf16.xpose.msra.mxu0 0
        %418 = vmatpush.bf16.xpose.msra.mxu0 0
        %419 = vmatpush.bf16.xpose.msra.mxu0 0
        %420 = vmatpush.bf16.xpose.msra.mxu0 0
        %421 = vmatpush.bf16.xpose.msra.mxu0 0
        %422 = vmatpush.bf16.xpose.msra.mxu0 0
        %423 = vmatpush.bf16.xpose.msra.mxu0 %v414
        %424 = vmatmul.bf16.gmra.mxu0 %v411
        %v425 = vpop.f32.mrf.mxu0
        %v426 = vadd.f32 0.0, %v425
        %v427 = vpop.f32.mrf.mxu0
        %v428 = vadd.f32 0.0, %v427
        %429 = vdwg.mxu0
        %v430 = vmul.f32 %v426, 0.25
        %v431 = vmul.f32 %v428, 0.25
        %v432 = vsel %vm409, %v430, -inf
        %433 = vmax.xlane.f32.xlu0 %v432
        %v434 = vpop.xlane.xlu0 %433
        %v435 = vsel %vm409, %v431, -inf
        %436 = vmax.xlane.f32.xlu0 %v435
        %v437 = vpop.xlane.xlu0 %436
        %v438 = vsub.f32 %v430, %v434
        %v439 = vsub.f32 %v431, %v437
        %v440 = vmul.f32 %v438, 1.442695
        %v441 = vpow.pop %v440
        %v442 = vmul.f32 %v439, 1.442695
        %v443 = vpow.pop %v442
        %v444 = vsel %vm409, %v441, 0.0
        %445 = vadd.xlane.f32.xlu0 %v444
        %v446 = vpop.xlane.xlu0 %445
        %v447 = vsel %vm409, %v443, 0.0
        %448 = vadd.xlane.f32.xlu0 %v447
        %v449 = vpop.xlane.xlu0 %448
        %v450 = vpack.c.bf16 %v443, %v441
        %v453 = vunpack.c.l.b16 %v397
        %v454 = vunpack.c.l.b16 %v398
        %v455 = vpack.c.b16 %v454, %v453
        %v458 = vsel %vm409, %v450, 0
        %460 = vmatpush.bf16.msra.mxu0 0
        %461 = vmatpush.bf16.msra.mxu0 0
        %462 = vmatpush.bf16.msra.mxu0 0
        %463 = vmatpush.bf16.msra.mxu0 0
        %464 = vmatpush.bf16.msra.mxu0 0
        %465 = vmatpush.bf16.msra.mxu0 0
        %466 = vmatpush.bf16.msra.mxu0 0
        %467 = vmatpush.bf16.msra.mxu0 %v455
        %468 = vmatmul.bf16.gmra.mxu0 %v458
        %v469 = vpop.f32.mrf.mxu0
        %v470 = vadd.f32 0.0, %v469
        %v471 = vpop.f32.mrf.mxu0
        %v472 = vadd.f32 0.0, %v471
        %473 = vdwg.mxu0
        %v474 = vrcp.pop %v446
        %v475 = vrcp.pop %v449
        %v476 = vmul.f32 %v470, %v474
        %v477 = vmul.f32 %v472, %v475
        %v478 = vpack.c.bf16 %v476, %v476
        %v479 = vpack.c.bf16 %v477, %v477
        %480 = vrot.lane.b32.xlu0 %v403, 112
        %v481 = vpop.permute.xlu0 %480
        %482 = vrot.lane.b32.xlu0 %v408, 112
        %v483 = vpop.permute.xlu0 %482
        %v485 = vsel %vm409, %v481, 0
        %v488 = vsel %vm409, %v483, 0
        %490 = vmatpush.bf16.xpose.msra.mxu0 0
        %491 = vmatpush.bf16.xpose.msra.mxu0 0
        %492 = vmatpush.bf16.xpose.msra.mxu0 0
        %493 = vmatpush.bf16.xpose.msra.mxu0 0
        %494 = vmatpush.bf16.xpose.msra.mxu0 0
        %495 = vmatpush.bf16.xpose.msra.mxu0 0
        %496 = vmatpush.bf16.xpose.msra.mxu0 0
        %497 = vmatpush.bf16.xpose.msra.mxu0 %v488
        %498 = vmatmul.bf16.gmra.mxu0 %v485
        %v499 = vpop.f32.mrf.mxu0
        %v500 = vadd.f32 0.0, %v499
        %v501 = vpop.f32.mrf.mxu0
        %v502 = vadd.f32 0.0, %v501
        %503 = vdwg.mxu0
        %v504 = vmul.f32 %v500, 0.25
        %v505 = vmul.f32 %v502, 0.25
        %v506 = vsel %vm409, %v504, -inf
        %507 = vmax.xlane.f32.xlu0 %v506
        %v508 = vpop.xlane.xlu0 %507
        %v509 = vsel %vm409, %v505, -inf
        %510 = vmax.xlane.f32.xlu0 %v509
        %v511 = vpop.xlane.xlu0 %510
        %v512 = vsub.f32 %v504, %v508
        %v513 = vsub.f32 %v505, %v511
        %v514 = vmul.f32 %v512, 1.442695
        %v515 = vpow.pop %v514
        %v516 = vmul.f32 %v513, 1.442695
        %v517 = vpow.pop %v516
        %v518 = vsel %vm409, %v515, 0.0
        %519 = vadd.xlane.f32.xlu0 %v518
        %v520 = vpop.xlane.xlu0 %519
        %v521 = vsel %vm409, %v517, 0.0
        %522 = vadd.xlane.f32.xlu0 %v521
        %v523 = vpop.xlane.xlu0 %522
        %v524 = vpack.c.bf16 %v517, %v515
        %525 = vrot.lane.b32.xlu0 %v455, 112
        %v526 = vpop.permute.xlu0 %525
        %v529 = vsel %vm409, %v524, 0
        %531 = vmatpush.bf16.msra.mxu0 0
        %532 = vmatpush.bf16.msra.mxu0 0
        %533 = vmatpush.bf16.msra.mxu0 0
        %534 = vmatpush.bf16.msra.mxu0 0
        %535 = vmatpush.bf16.msra.mxu0 0
        %536 = vmatpush.bf16.msra.mxu0 0
        %537 = vmatpush.bf16.msra.mxu0 0
        %538 = vmatpush.bf16.msra.mxu0 %v526
        %539 = vmatmul.bf16.gmra.mxu0 %v529
        %v540 = vpop.f32.mrf.mxu0
        %v541 = vadd.f32 0.0, %v540
        %v542 = vpop.f32.mrf.mxu0
        %v543 = vadd.f32 0.0, %v542
        %544 = vdwg.mxu0
        %v545 = vrcp.pop %v520
        %v546 = vrcp.pop %v523
        %v547 = vmul.f32 %v541, %v545
        %v548 = vmul.f32 %v543, %v546
        %v549 = vpack.c.bf16 %v547, %v547
        %v550 = vpack.c.bf16 %v548, %v548
        %551 = vrot.lane.b32.xlu0 %v403, 96
        %v552 = vpop.permute.xlu0 %551
        %553 = vrot.lane.b32.xlu0 %v408, 96
        %v554 = vpop.permute.xlu0 %553
        %v556 = vsel %vm409, %v552, 0
        %v559 = vsel %vm409, %v554, 0
        %561 = vmatpush.bf16.xpose.msra.mxu0 0
        %562 = vmatpush.bf16.xpose.msra.mxu0 0
        %563 = vmatpush.bf16.xpose.msra.mxu0 0
        %564 = vmatpush.bf16.xpose.msra.mxu0 0
        %565 = vmatpush.bf16.xpose.msra.mxu0 0
        %566 = vmatpush.bf16.xpose.msra.mxu0 0
        %567 = vmatpush.bf16.xpose.msra.mxu0 0
        %568 = vmatpush.bf16.xpose.msra.mxu0 %v559
        %569 = vmatmul.bf16.gmra.mxu0 %v556
        %v570 = vpop.f32.mrf.mxu0
        %v571 = vadd.f32 0.0, %v570
        %v572 = vpop.f32.mrf.mxu0
        %v573 = vadd.f32 0.0, %v572
        %574 = vdwg.mxu0
        %v575 = vmul.f32 %v571, 0.25
        %v576 = vmul.f32 %v573, 0.25
        %v577 = vsel %vm409, %v575, -inf
        %578 = vmax.xlane.f32.xlu0 %v577
        %v579 = vpop.xlane.xlu0 %578
        %v580 = vsel %vm409, %v576, -inf
        %581 = vmax.xlane.f32.xlu0 %v580
        %v582 = vpop.xlane.xlu0 %581
        %v583 = vsub.f32 %v575, %v579
        %v584 = vsub.f32 %v576, %v582
        %v585 = vmul.f32 %v583, 1.442695
        %v586 = vpow.pop %v585
        %v587 = vmul.f32 %v584, 1.442695
        %v588 = vpow.pop %v587
        %v589 = vsel %vm409, %v586, 0.0
        %590 = vadd.xlane.f32.xlu0 %v589
        %v591 = vpop.xlane.xlu0 %590
        %v592 = vsel %vm409, %v588, 0.0
        %593 = vadd.xlane.f32.xlu0 %v592
        %v594 = vpop.xlane.xlu0 %593
        %v595 = vpack.c.bf16 %v588, %v586
        %596 = vrot.lane.b32.xlu0 %v455, 96
        %v597 = vpop.permute.xlu0 %596
        %v600 = vsel %vm409, %v595, 0
        %602 = vmatpush.bf16.msra.mxu0 0
        %603 = vmatpush.bf16.msra.mxu0 0
        %604 = vmatpush.bf16.msra.mxu0 0
        %605 = vmatpush.bf16.msra.mxu0 0
        %606 = vmatpush.bf16.msra.mxu0 0
        %607 = vmatpush.bf16.msra.mxu0 0
        %608 = vmatpush.bf16.msra.mxu0 0
        %609 = vmatpush.bf16.msra.mxu0 %v597
        %610 = vmatmul.bf16.gmra.mxu0 %v600
        %v611 = vpop.f32.mrf.mxu0
        %v612 = vadd.f32 0.0, %v611
        %v613 = vpop.f32.mrf.mxu0
        %v614 = vadd.f32 0.0, %v613
        %615 = vdwg.mxu0
        %v616 = vrcp.pop %v591
        %v617 = vrcp.pop %v594
        %v618 = vmul.f32 %v612, %v616
        %v619 = vmul.f32 %v614, %v617
        %v620 = vpack.c.bf16 %v618, %v618
        %v621 = vpack.c.bf16 %v619, %v619
        %622 = vrot.lane.b32.xlu0 %v403, 80
        %v623 = vpop.permute.xlu0 %622
        %624 = vrot.lane.b32.xlu0 %v408, 80
        %v625 = vpop.permute.xlu0 %624
        %v627 = vsel %vm409, %v623, 0
        %v630 = vsel %vm409, %v625, 0
        %632 = vmatpush.bf16.xpose.msra.mxu0 0
        %633 = vmatpush.bf16.xpose.msra.mxu0 0
        %634 = vmatpush.bf16.xpose.msra.mxu0 0
        %635 = vmatpush.bf16.xpose.msra.mxu0 0
        %636 = vmatpush.bf16.xpose.msra.mxu0 0
        %637 = vmatpush.bf16.xpose.msra.mxu0 0
        %638 = vmatpush.bf16.xpose.msra.mxu0 0
        %639 = vmatpush.bf16.xpose.msra.mxu0 %v630
        %640 = vmatmul.bf16.gmra.mxu0 %v627
        %v641 = vpop.f32.mrf.mxu0
        %v642 = vadd.f32 0.0, %v641
        %v643 = vpop.f32.mrf.mxu0
        %v644 = vadd.f32 0.0, %v643
        %645 = vdwg.mxu0
        %v646 = vmul.f32 %v642, 0.25
        %v647 = vmul.f32 %v644, 0.25
        %v648 = vsel %vm409, %v646, -inf
        %649 = vmax.xlane.f32.xlu0 %v648
        %v650 = vpop.xlane.xlu0 %649
        %v651 = vsel %vm409, %v647, -inf
        %652 = vmax.xlane.f32.xlu0 %v651
        %v653 = vpop.xlane.xlu0 %652
        %v654 = vsub.f32 %v646, %v650
        %v655 = vsub.f32 %v647, %v653
        %v656 = vmul.f32 %v654, 1.442695
        %v657 = vpow.pop %v656
        %v658 = vmul.f32 %v655, 1.442695
        %v659 = vpow.pop %v658
        %v660 = vsel %vm409, %v657, 0.0
        %661 = vadd.xlane.f32.xlu0 %v660
        %v662 = vpop.xlane.xlu0 %661
        %v663 = vsel %vm409, %v659, 0.0
        %664 = vadd.xlane.f32.xlu0 %v663
        %v665 = vpop.xlane.xlu0 %664
        %v666 = vpack.c.bf16 %v659, %v657
        %667 = vrot.lane.b32.xlu0 %v455, 80
        %v668 = vpop.permute.xlu0 %667
        %v671 = vsel %vm409, %v666, 0
        %673 = vmatpush.bf16.msra.mxu0 0
        %674 = vmatpush.bf16.msra.mxu0 0
        %675 = vmatpush.bf16.msra.mxu0 0
        %676 = vmatpush.bf16.msra.mxu0 0
        %677 = vmatpush.bf16.msra.mxu0 0
        %678 = vmatpush.bf16.msra.mxu0 0
        %679 = vmatpush.bf16.msra.mxu0 0
        %680 = vmatpush.bf16.msra.mxu0 %v668
        %681 = vmatmul.bf16.gmra.mxu0 %v671
        %v682 = vpop.f32.mrf.mxu0
        %v683 = vadd.f32 0.0, %v682
        %v684 = vpop.f32.mrf.mxu0
        %v685 = vadd.f32 0.0, %v684
        %686 = vdwg.mxu0
        %v687 = vrcp.pop %v662
        %v688 = vrcp.pop %v665
        %v689 = vmul.f32 %v683, %v687
        %v690 = vmul.f32 %v685, %v688
        %v691 = vpack.c.bf16 %v689, %v689
        %v692 = vpack.c.bf16 %v690, %v690
        %693 = vrot.lane.b32.xlu0 %v403, 64
        %v694 = vpop.permute.xlu0 %693
        %695 = vrot.lane.b32.xlu0 %v408, 64
        %v696 = vpop.permute.xlu0 %695
        %v698 = vsel %vm409, %v694, 0
        %v701 = vsel %vm409, %v696, 0
        %703 = vmatpush.bf16.xpose.msra.mxu0 0
        %704 = vmatpush.bf16.xpose.msra.mxu0 0
        %705 = vmatpush.bf16.xpose.msra.mxu0 0
        %706 = vmatpush.bf16.xpose.msra.mxu0 0
        %707 = vmatpush.bf16.xpose.msra.mxu0 0
        %708 = vmatpush.bf16.xpose.msra.mxu0 0
        %709 = vmatpush.bf16.xpose.msra.mxu0 0
        %710 = vmatpush.bf16.xpose.msra.mxu0 %v701
        %711 = vmatmul.bf16.gmra.mxu0 %v698
        %v712 = vpop.f32.mrf.mxu0
        %v713 = vadd.f32 0.0, %v712
        %v714 = vpop.f32.mrf.mxu0
        %v715 = vadd.f32 0.0, %v714
        %716 = vdwg.mxu0
        %v717 = vmul.f32 %v713, 0.25
        %v718 = vmul.f32 %v715, 0.25
        %v719 = vsel %vm409, %v717, -inf
        %720 = vmax.xlane.f32.xlu0 %v719
        %v721 = vpop.xlane.xlu0 %720
        %v722 = vsel %vm409, %v718, -inf
        %723 = vmax.xlane.f32.xlu0 %v722
        %v724 = vpop.xlane.xlu0 %723
        %v725 = vsub.f32 %v717, %v721
        %v726 = vsub.f32 %v718, %v724
        %v727 = vmul.f32 %v725, 1.442695
        %v728 = vpow.pop %v727
        %v729 = vmul.f32 %v726, 1.442695
        %v730 = vpow.pop %v729
        %v731 = vsel %vm409, %v728, 0.0
        %732 = vadd.xlane.f32.xlu0 %v731
        %v733 = vpop.xlane.xlu0 %732
        %v734 = vsel %vm409, %v730, 0.0
        %735 = vadd.xlane.f32.xlu0 %v734
        %v736 = vpop.xlane.xlu0 %735
        %v737 = vpack.c.bf16 %v730, %v728
        %738 = vrot.lane.b32.xlu0 %v455, 64
        %v739 = vpop.permute.xlu0 %738
        %v742 = vsel %vm409, %v737, 0
        %744 = vmatpush.bf16.msra.mxu0 0
        %745 = vmatpush.bf16.msra.mxu0 0
        %746 = vmatpush.bf16.msra.mxu0 0
        %747 = vmatpush.bf16.msra.mxu0 0
        %748 = vmatpush.bf16.msra.mxu0 0
        %749 = vmatpush.bf16.msra.mxu0 0
        %750 = vmatpush.bf16.msra.mxu0 0
        %751 = vmatpush.bf16.msra.mxu0 %v739
        %752 = vmatmul.bf16.gmra.mxu0 %v742
        %v753 = vpop.f32.mrf.mxu0
        %v754 = vadd.f32 0.0, %v753
        %v755 = vpop.f32.mrf.mxu0
        %v756 = vadd.f32 0.0, %v755
        %757 = vdwg.mxu0
        %v758 = vrcp.pop %v733
        %v759 = vrcp.pop %v736
        %v760 = vmul.f32 %v754, %v758
        %v761 = vmul.f32 %v756, %v759
        %v762 = vpack.c.bf16 %v760, %v760
        %v763 = vpack.c.bf16 %v761, %v761
        %764 = vrot.lane.b32.xlu0 %v403, 48
        %v765 = vpop.permute.xlu0 %764
        %766 = vrot.lane.b32.xlu0 %v408, 48
        %v767 = vpop.permute.xlu0 %766
        %v769 = vsel %vm409, %v765, 0
        %v772 = vsel %vm409, %v767, 0
        %774 = vmatpush.bf16.xpose.msra.mxu0 0
        %775 = vmatpush.bf16.xpose.msra.mxu0 0
        %776 = vmatpush.bf16.xpose.msra.mxu0 0
        %777 = vmatpush.bf16.xpose.msra.mxu0 0
        %778 = vmatpush.bf16.xpose.msra.mxu0 0
        %779 = vmatpush.bf16.xpose.msra.mxu0 0
        %780 = vmatpush.bf16.xpose.msra.mxu0 0
        %781 = vmatpush.bf16.xpose.msra.mxu0 %v772
        %782 = vmatmul.bf16.gmra.mxu0 %v769
        %v783 = vpop.f32.mrf.mxu0
        %v784 = vadd.f32 0.0, %v783
        %v785 = vpop.f32.mrf.mxu0
        %v786 = vadd.f32 0.0, %v785
        %787 = vdwg.mxu0
        %v788 = vmul.f32 %v784, 0.25
        %v789 = vmul.f32 %v786, 0.25
        %v790 = vsel %vm409, %v788, -inf
        %791 = vmax.xlane.f32.xlu0 %v790
        %v792 = vpop.xlane.xlu0 %791
        %v793 = vsel %vm409, %v789, -inf
        %794 = vmax.xlane.f32.xlu0 %v793
        %v795 = vpop.xlane.xlu0 %794
        %v796 = vsub.f32 %v788, %v792
        %v797 = vsub.f32 %v789, %v795
        %v798 = vmul.f32 %v796, 1.442695
        %v799 = vpow.pop %v798
        %v800 = vmul.f32 %v797, 1.442695
        %v801 = vpow.pop %v800
        %v802 = vsel %vm409, %v799, 0.0
        %803 = vadd.xlane.f32.xlu0 %v802
        %v804 = vpop.xlane.xlu0 %803
        %v805 = vsel %vm409, %v801, 0.0
        %806 = vadd.xlane.f32.xlu0 %v805
        %v807 = vpop.xlane.xlu0 %806
        %v808 = vpack.c.bf16 %v801, %v799
        %809 = vrot.lane.b32.xlu0 %v455, 48
        %v810 = vpop.permute.xlu0 %809
        %v813 = vsel %vm409, %v808, 0
        %815 = vmatpush.bf16.msra.mxu0 0
        %816 = vmatpush.bf16.msra.mxu0 0
        %817 = vmatpush.bf16.msra.mxu0 0
        %818 = vmatpush.bf16.msra.mxu0 0
        %819 = vmatpush.bf16.msra.mxu0 0
        %820 = vmatpush.bf16.msra.mxu0 0
        %821 = vmatpush.bf16.msra.mxu0 0
        %822 = vmatpush.bf16.msra.mxu0 %v810
        %823 = vmatmul.bf16.gmra.mxu0 %v813
        %v824 = vpop.f32.mrf.mxu0
        %v825 = vadd.f32 0.0, %v824
        %v826 = vpop.f32.mrf.mxu0
        %v827 = vadd.f32 0.0, %v826
        %828 = vdwg.mxu0
        %v829 = vrcp.pop %v804
        %v830 = vrcp.pop %v807
        %v831 = vmul.f32 %v825, %v829
        %v832 = vmul.f32 %v827, %v830
        %v833 = vpack.c.bf16 %v831, %v831
        %v834 = vpack.c.bf16 %v832, %v832
        %835 = vrot.lane.b32.xlu0 %v403, 32
        %v836 = vpop.permute.xlu0 %835
        %837 = vrot.lane.b32.xlu0 %v408, 32
        %v838 = vpop.permute.xlu0 %837
        %v840 = vsel %vm409, %v836, 0
        %v843 = vsel %vm409, %v838, 0
        %845 = vmatpush.bf16.xpose.msra.mxu0 0
        %846 = vmatpush.bf16.xpose.msra.mxu0 0
        %847 = vmatpush.bf16.xpose.msra.mxu0 0
        %848 = vmatpush.bf16.xpose.msra.mxu0 0
        %849 = vmatpush.bf16.xpose.msra.mxu0 0
        %850 = vmatpush.bf16.xpose.msra.mxu0 0
        %851 = vmatpush.bf16.xpose.msra.mxu0 0
        %852 = vmatpush.bf16.xpose.msra.mxu0 %v843
        %853 = vmatmul.bf16.gmra.mxu0 %v840
        %v854 = vpop.f32.mrf.mxu0
        %v855 = vadd.f32 0.0, %v854
        %v856 = vpop.f32.mrf.mxu0
        %v857 = vadd.f32 0.0, %v856
        %858 = vdwg.mxu0
        %v859 = vmul.f32 %v855, 0.25
        %v860 = vmul.f32 %v857, 0.25
        %v861 = vsel %vm409, %v859, -inf
        %862 = vmax.xlane.f32.xlu0 %v861
        %v863 = vpop.xlane.xlu0 %862
        %v864 = vsel %vm409, %v860, -inf
        %865 = vmax.xlane.f32.xlu0 %v864
        %v866 = vpop.xlane.xlu0 %865
        %v867 = vsub.f32 %v859, %v863
        %v868 = vsub.f32 %v860, %v866
        %v869 = vmul.f32 %v867, 1.442695
        %v870 = vpow.pop %v869
        %v871 = vmul.f32 %v868, 1.442695
        %v872 = vpow.pop %v871
        %v873 = vsel %vm409, %v870, 0.0
        %874 = vadd.xlane.f32.xlu0 %v873
        %v875 = vpop.xlane.xlu0 %874
        %v876 = vsel %vm409, %v872, 0.0
        %877 = vadd.xlane.f32.xlu0 %v876
        %v878 = vpop.xlane.xlu0 %877
        %v879 = vpack.c.bf16 %v872, %v870
        %880 = vrot.lane.b32.xlu0 %v455, 32
        %v881 = vpop.permute.xlu0 %880
        %v884 = vsel %vm409, %v879, 0
        %886 = vmatpush.bf16.msra.mxu0 0
        %887 = vmatpush.bf16.msra.mxu0 0
        %888 = vmatpush.bf16.msra.mxu0 0
        %889 = vmatpush.bf16.msra.mxu0 0
        %890 = vmatpush.bf16.msra.mxu0 0
        %891 = vmatpush.bf16.msra.mxu0 0
        %892 = vmatpush.bf16.msra.mxu0 0
        %893 = vmatpush.bf16.msra.mxu0 %v881
        %894 = vmatmul.bf16.gmra.mxu0 %v884
        %v895 = vpop.f32.mrf.mxu0
        %v896 = vadd.f32 0.0, %v895
        %v897 = vpop.f32.mrf.mxu0
        %v898 = vadd.f32 0.0, %v897
        %899 = vdwg.mxu0
        %v900 = vrcp.pop %v875
        %v901 = vrcp.pop %v878
        %v902 = vmul.f32 %v896, %v900
        %v903 = vmul.f32 %v898, %v901
        %v904 = vpack.c.bf16 %v902, %v902
        %v905 = vpack.c.bf16 %v903, %v903
        %906 = vrot.lane.b32.xlu0 %v403, 16
        %v907 = vpop.permute.xlu0 %906
        %908 = vrot.lane.b32.xlu0 %v408, 16
        %v909 = vpop.permute.xlu0 %908
        %v911 = vsel %vm409, %v907, 0
        %v914 = vsel %vm409, %v909, 0
        %916 = vmatpush.bf16.xpose.msra.mxu0 0
        %917 = vmatpush.bf16.xpose.msra.mxu0 0
        %918 = vmatpush.bf16.xpose.msra.mxu0 0
        %919 = vmatpush.bf16.xpose.msra.mxu0 0
        %920 = vmatpush.bf16.xpose.msra.mxu0 0
        %921 = vmatpush.bf16.xpose.msra.mxu0 0
        %922 = vmatpush.bf16.xpose.msra.mxu0 0
        %923 = vmatpush.bf16.xpose.msra.mxu0 %v914
        %924 = vmatmul.bf16.gmra.mxu0 %v911
        %v925 = vpop.f32.mrf.mxu0
        %v926 = vadd.f32 0.0, %v925
        %v927 = vpop.f32.mrf.mxu0
        %v928 = vadd.f32 0.0, %v927
        %929 = vdwg.mxu0
        %v930 = vmul.f32 %v926, 0.25
        %v931 = vmul.f32 %v928, 0.25
        %v932 = vsel %vm409, %v930, -inf
        %933 = vmax.xlane.f32.xlu0 %v932
        %v934 = vpop.xlane.xlu0 %933
        %v935 = vsel %vm409, %v931, -inf
        %936 = vmax.xlane.f32.xlu0 %v935
        %v937 = vpop.xlane.xlu0 %936
        %v938 = vsub.f32 %v930, %v934
        %v939 = vsub.f32 %v931, %v937
        %v940 = vmul.f32 %v938, 1.442695
        %v941 = vpow.pop %v940
        %v942 = vmul.f32 %v939, 1.442695
        %v943 = vpow.pop %v942
        %v944 = vsel %vm409, %v941, 0.0
        %945 = vadd.xlane.f32.xlu0 %v944
        %v946 = vpop.xlane.xlu0 %945
        %v947 = vsel %vm409, %v943, 0.0
        %948 = vadd.xlane.f32.xlu0 %v947
        %v949 = vpop.xlane.xlu0 %948
        %v950 = vpack.c.bf16 %v943, %v941
        %951 = vrot.lane.b32.xlu0 %v455, 16
        %v952 = vpop.permute.xlu0 %951
        %v955 = vsel %vm409, %v950, 0
        %957 = vmatpush.bf16.msra.mxu0 0
        %958 = vmatpush.bf16.msra.mxu0 0
        %959 = vmatpush.bf16.msra.mxu0 0
        %960 = vmatpush.bf16.msra.mxu0 0
        %961 = vmatpush.bf16.msra.mxu0 0
        %962 = vmatpush.bf16.msra.mxu0 0
        %963 = vmatpush.bf16.msra.mxu0 0
        %964 = vmatpush.bf16.msra.mxu0 %v952
        %965 = vmatmul.bf16.gmra.mxu0 %v955
        %v966 = vpop.f32.mrf.mxu0
        %v967 = vadd.f32 0.0, %v966
        %v968 = vpop.f32.mrf.mxu0
        %v969 = vadd.f32 0.0, %v968
        %970 = vdwg.mxu0
        %v971 = vrcp.pop %v946
        %v972 = vrcp.pop %v949
        %v973 = vmul.f32 %v967, %v971
        %v974 = vmul.f32 %v969, %v972
        %v975 = vpack.c.bf16 %v973, %v973
        %v976 = vpack.c.bf16 %v974, %v974
        %v979 = vunpack.c.l.b16 %v478
        %v980 = vunpack.c.l.b16 %v479
        %v981 = vpack.c.b16 %v980, %v979
        %v984 = vunpack.c.l.b16 %v549
        %v985 = vunpack.c.l.b16 %v550
        %v986 = vpack.c.b16 %v985, %v984
        %987 = vrot.lane.b32.xlu0 %v986, 16
        %v988 = vpop.permute.xlu0 %987
        %v991 = vunpack.c.l.b16 %v620
        %v992 = vunpack.c.l.b16 %v621
        %v993 = vpack.c.b16 %v992, %v991
        %994 = vrot.lane.b32.xlu0 %v993, 32
        %v995 = vpop.permute.xlu0 %994
        %v998 = vunpack.c.l.b16 %v691
        %v999 = vunpack.c.l.b16 %v692
        %v1000 = vpack.c.b16 %v999, %v998
        %1001 = vrot.lane.b32.xlu0 %v1000, 48
        %v1002 = vpop.permute.xlu0 %1001
        %v1005 = vunpack.c.l.b16 %v762
        %v1006 = vunpack.c.l.b16 %v763
        %v1007 = vpack.c.b16 %v1006, %v1005
        %1008 = vrot.lane.b32.xlu0 %v1007, 64
        %v1009 = vpop.permute.xlu0 %1008
        %v1012 = vunpack.c.l.b16 %v833
        %v1013 = vunpack.c.l.b16 %v834
        %v1014 = vpack.c.b16 %v1013, %v1012
        %1015 = vrot.lane.b32.xlu0 %v1014, 80
        %v1016 = vpop.permute.xlu0 %1015
        %v1019 = vunpack.c.l.b16 %v904
        %v1020 = vunpack.c.l.b16 %v905
        %v1021 = vpack.c.b16 %v1020, %v1019
        %1022 = vrot.lane.b32.xlu0 %v1021, 96
        %v1023 = vpop.permute.xlu0 %1022
        %v1026 = vunpack.c.l.b16 %v975
        %v1027 = vunpack.c.l.b16 %v976
        %v1028 = vpack.c.b16 %v1027, %v1026
        %1029 = vrot.lane.b32.xlu0 %v1028, 112
        %v1030 = vpop.permute.xlu0 %1029
        %v1033 = vsel %vm409, %v981, %v988
        %vm1034 = vcmask 261120
        %v1036 = vsel %vm1034, %v1033, %v995
        %vm1037 = vcmask 392192
        %v1039 = vsel %vm1037, %v1036, %v1002
        %vm1040 = vcmask 523264
        %v1042 = vsel %vm1040, %v1039, %v1009
        %vm1043 = vcmask 654336
        %v1045 = vsel %vm1043, %v1042, %v1016
        %vm1046 = vcmask 785408
        %v1048 = vsel %vm1046, %v1045, %v1023
        %vm1049 = vcmask 916480
        %v1051 = vsel %vm1049, %v1048, %v1030
        %v1053 = vunpack.c.l.b16 %v1051
        %v1054 = vunpack.c.h.b16 %v1051
        %v1055 = vpack.c.b16 %v1053, %v1053
        %v1056 = vpack.c.b16 %v1054, %v1054
        %1059 = vst [vmem:[%s391] sm:$0xf] %v1055
        %1060 = vst [vmem:[%s391 + $0x4] sm:$0xf] %v1056
        %p1061 = scmp.lt.s32.totalorder %s18, 1
        %s1062 = scalar_select %p1061, %s18, 1
        %p1063 = scmp.lt.s32.totalorder %s19, 0
        %s1064 = scalar_select %p1063, %s19, 0
        %s1065 = smul.addr %s1062, 2
        %s1066 = sadd.s32 %s1064, %s1065
        %s1067 = smul.addr %s1066, 4
        %s1068 = scalar_lea.vmem %s3, %s1067
        // Predicated region
        $region156: #{attention_forward.4} parent=142 // pred_check
          %p1069 = pneg %p134
        $region157: #{attention_forward.4} parent=142 // pred_check_branch
          %1071 = sbr.rel (%p1069) target = $region159
        $region158: #{attention_forward.4} parent=142 // pred_region
          _
        $region159: #{attention_forward.4} parent=142 // pred_fallthru
          _
      $region143: #{attention_forward.4} parent=5 // pred_fallthru
        _
      %p1072 = scmp.le.s32.totalorder 2, %s9
      // Predicated region
      $region160: #{attention_forward.4} parent=5 // pred_check
        %p1073 = pneg %p1072
      $region161: #{attention_forward.4} parent=5 // pred_check_branch
        %1075 = sbr.rel (%p1073) target = $region163
      $region162: #{attention_forward.4} parent=5 // pred_region
        %s1076 = ssub.s32 %s9, 2
        // Predicated region
        $region164: #{attention_forward.4} parent=162 // pred_check
          %p1077 = pneg %p140
        $region165: #{attention_forward.4} parent=162 // pred_check_branch
          %1079 = sbr.rel (%p1077) target = $region167
        $region166: #{attention_forward.4} parent=162 // pred_region
          %p1080 = scmp.lt.s32.totalorder %s20, 1
          %s1081 = scalar_select %p1080, %s20, 1
          %p1082 = scmp.lt.s32.totalorder %s21, 0
          %s1083 = scalar_select %p1082, %s21, 0
          %s1084 = smul.addr %s1081, 2
          %s1085 = sadd.s32 %s1083, %s1084
          %s1086 = smul.addr %s1085, 4
          %s1087 = scalar_lea.vmem %s3, %s1086
        $region167: #{attention_forward.4} parent=162 // pred_fallthru
          _
      $region163: #{attention_forward.4} parent=5 // pred_fallthru
        _
    $region6: #{attention_forward.4} parent=1 // loop_footer
      %s13 = sadd.s32 1, %s9
    $region7: #{attention_forward.4} parent=1 // loop_footer_branch
      %8 = sbr.rel target = $region3
    $region8: #{attention_forward.4} parent=1 // loop_exit
      _

</llo_original>
